<compile_context>
chip_gen: v7x
topology: tpu7x:2x2x1
jax: 0.10.0
libtpu: 0.0.40
codegen_flags: <defaults>
</compile_context>

<pallas_src>
import functools

import jax
import jax.numpy as jnp
from jax.experimental import pallas as pl
from jax.experimental.pallas import tpu as pltpu


# ----------------------------------------------------------------------------
# Fused Pallas kernel: conv1 + ELU + conv2 (eval-mode forward of PAGATNet)
# ----------------------------------------------------------------------------
def pagat_net_kernel(src_ref, dst_ref, x_ref,
                     w1_ref, a1d_ref, a1s_ref, rep1_ref, b1_ref,
                     w2_ref, a2d_ref, a2s_ref, rep2_ref, m2_ref, b2_ref,
                     padh_ref,
                     out_ref, att_ref, *, neg_slope):
    f32 = jnp.float32
    bf16 = jnp.bfloat16
    E = src_ref.shape[0]
    N = x_ref.shape[0]

    # Edge selector matrices, built ONCE, compare+cast directly to bf16
    # (exact 0/1; no f32 intermediate, half the VMEM of f32 selectors).
    col_ids = jax.lax.broadcasted_iota(jnp.int32, (E, N), 1)
    s_src = (col_ids == src_ref[...]).astype(bf16)        # [E, N] bf16
    s_dst = (col_ids == dst_ref[...]).astype(bf16)        # [E, N] bf16

    def scatter_to_nodes(values_b):
        # out[n, :] = sum_{e : dst[e] == n} values[e, :]
        # = s_dst^T @ values as a transposed-lhs MXU contraction (bf16 in,
        # f32 accumulate); the [N, E] transpose is never materialized.
        return jax.lax.dot_general(s_dst, values_b, (((0,), (0,)), ((), ())),
                                   preferred_element_type=f32)

    def gat_layer(x_b, w_b, a_dst, a_src, rep, need_alpha):
        # Linear transform for all heads at once (bf16 operands, f32 acc).
        h = jnp.dot(x_b, w_b, preferred_element_type=f32)            # [N, H*C] f32
        h_b = h.astype(bf16)
        rep_b = rep.astype(bf16)

        # Node-level attention projections (no h_dst gather needed).
        g_dst = jnp.dot(h_b, a_dst.astype(bf16),
                        preferred_element_type=f32).astype(bf16)     # [N, H]
        g_src = jnp.dot(h_b, a_src.astype(bf16),
                        preferred_element_type=f32).astype(bf16)     # [N, H]

        # Edge scores via two narrow [E,N]x[N,H] gathers.
        score = (jnp.dot(s_dst, g_dst, preferred_element_type=f32)
                 + jnp.dot(s_src, g_src, preferred_element_type=f32))  # [E, H]
        score = jnp.where(score > 0, score, neg_slope * score)         # leaky relu

        # Segment softmax over edges sharing a dst node.  Softmax is
        # shift-invariant per group, so a global per-head max is identical.
        m = jnp.max(score, axis=0, keepdims=True)                      # [1, H]
        e = jnp.exp(score - m)                                         # [E, H] f32
        e_b = e.astype(bf16)

        # Source-endpoint gather for the message path only.
        h_src = jnp.dot(s_src, h_b, preferred_element_type=f32)        # [E, H*C]
        denom_node = scatter_to_nodes(e_b)                             # [N, H]

        if need_alpha:
            # Edge-side normalization (alpha is a kernel output).
            denom_edge = jnp.dot(s_dst, denom_node.astype(bf16),
                                 preferred_element_type=f32)           # [E, H]
            alpha = e / jnp.maximum(denom_edge, 1e-30)                 # [E, H]
            msg = h_src * jnp.dot(alpha.astype(bf16), rep_b,
                                  preferred_element_type=f32)          # [E, H*C]
            out = scatter_to_nodes(msg.astype(bf16))                   # [N, H*C]
            return out, alpha

        # conv1: node-side normalization — no denom_edge gather, no per-edge
        # divide; divide the aggregated [N, H*C] once at the node level.
        msg = h_src * jnp.dot(e_b, rep_b, preferred_element_type=f32)  # [E, H*C]
        out_unnorm = scatter_to_nodes(msg.astype(bf16))                # [N, H*C]
        denom_bcast = jnp.dot(denom_node.astype(bf16), rep_b,
                              preferred_element_type=f32)              # [N, H*C]
        out = out_unnorm / jnp.maximum(denom_bcast, 1e-30)
        return out, None

    # conv1 (concat heads) + bias + ELU; h1 stays in VMEM values/registers.
    x_b = x_ref[...].astype(bf16)
    h1, _ = gat_layer(x_b, w1_ref[...].astype(bf16),
                      a1d_ref[...], a1s_ref[...], rep1_ref[...], False)
    h1 = h1 + b1_ref[...]
    # ELU; exp only evaluated on non-positive values (no inf lanes).  See TODO
    # in the header re: expm1.
    h1 = jnp.where(h1 > 0, h1, jnp.exp(jnp.minimum(h1, 0.0)) - 1.0)

    # conv2 (mean over heads).  Head-mean matrix is pre-padded to 128 output
    # lanes, so the final store is a dense, unmasked 128-lane store.
    h2, alpha2 = gat_layer(h1.astype(bf16), w2_ref[...].astype(bf16),
                           a2d_ref[...], a2s_ref[...], rep2_ref[...], True)
    out_ref[...] = (jnp.dot(h2.astype(bf16), m2_ref[...].astype(bf16),
                            preferred_element_type=f32) + b2_ref[...])
    # Lane-dense attention store: pad [E, H] -> [E, 128] with a tiny static
    # matmul so no masked partial stores are emitted.
    att_ref[...] = jnp.dot(alpha2.astype(bf16), padh_ref[...].astype(bf16),
                           preferred_element_type=f32)


# ----------------------------------------------------------------------------
# Wrapper helpers (static matrices built once, outside the kernel)
# ----------------------------------------------------------------------------
def _split_attention(att, out_ch):
    """att [H, 2C] -> block-diagonal projections a_dst, a_src of shape [H*C, H]."""
    heads = att.shape[0]
    eye = jnp.eye(heads, dtype=jnp.float32)
    a_dst = (att[:, :out_ch][:, :, None] * eye[:, None, :]).reshape(
        heads * out_ch, heads)
    a_src = (att[:, out_ch:][:, :, None] * eye[:, None, :]).reshape(
        heads * out_ch, heads)
    return a_dst, a_src


def _cost_estimate(N, E, f_in, heads, c1, c2, out_pad):
    hc1, hc2 = heads * c1, heads * c2
    mm = lambda m, k, n: 2 * m * k * n
    flops = (mm(N, f_in, hc1) + mm(N, hc1, hc2)                    # x @ W
             + 2 * (mm(N, hc1, heads) + mm(N, hc2, heads))         # node g_dst/g_src
             + 4 * mm(E, N, heads)                                 # score gathers
             + mm(E, N, hc1) + mm(E, N, hc2)                       # h_src gathers
             + 2 * mm(N, E, heads) + mm(E, N, heads)               # denoms
             + mm(E, heads, hc1) + mm(E, heads, hc2)               # e/alpha broadcast
             + mm(N, heads, hc1)                                   # conv1 node denom
             + mm(N, E, hc1) + mm(N, E, hc2)                       # aggregation
             + mm(N, hc2, out_pad) + mm(E, heads, out_pad))        # head mean + att pad
    transcendentals = 2 * E * heads + N * hc1                      # softmax + ELU exps
    bytes_accessed = 4 * (N * f_in + f_in * hc1 + hc1 * hc2 + 2 * E
                          + 2 * heads * (c1 + c2) + hc1 + 2 * out_pad
                          + N * out_pad + E * out_pad)
    return pl.CostEstimate(flops=int(flops), transcendentals=int(transcendentals),
                           bytes_accessed=int(bytes_accessed))


# ----------------------------------------------------------------------------
# Full PAGATNet forward (eval mode)
# ----------------------------------------------------------------------------
def pagat_net_forward(params, x, path_index, *, heads, hidden_size, repr_dim):
    dst = path_index[0].astype(jnp.int32)      # target nodes (aggregation side)
    src = path_index[-1].astype(jnp.int32)     # source nodes (path end)
    E = src.shape[0]
    N, emb_dim = x.shape
    out_pad = 128                              # lane-dense output width

    src_col = src.reshape(E, 1)
    dst_col = dst.reshape(E, 1)

    # Static per-layer matrices (head projections, repeat / head-mean / pad maps).
    a1_dst, a1_src = _split_attention(params["att1"], hidden_size)
    rep1 = jnp.repeat(jnp.eye(heads, dtype=jnp.float32), hidden_size, axis=1)
    a2_dst, a2_src = _split_attention(params["att2"], repr_dim)
    rep2 = jnp.repeat(jnp.eye(heads, dtype=jnp.float32), repr_dim, axis=1)
    m2 = jnp.tile(jnp.eye(repr_dim, dtype=jnp.float32), (heads, 1)) / heads
    m2_pad = jnp.pad(m2, ((0, 0), (0, out_pad - repr_dim)))            # [H*C2, 128]
    b2_pad = jnp.pad(params["b2"], ((0, 0), (0, out_pad - repr_dim)))  # [1, 128]
    pad_h = jnp.pad(jnp.eye(heads, dtype=jnp.float32),
                    ((0, 0), (0, out_pad - heads)))                    # [H, 128]

    kernel = functools.partial(pagat_net_kernel, neg_slope=0.2)
    vmem = pl.BlockSpec(memory_space=pltpu.MemorySpace.VMEM)

    out_padded, att_padded = pl.pallas_call(
        kernel,
        out_shape=(jax.ShapeDtypeStruct((N, out_pad), jnp.float32),
                   jax.ShapeDtypeStruct((E, out_pad), jnp.float32)),
        in_specs=[vmem] * 15,
        out_specs=(vmem, vmem),
        compiler_params=pltpu.CompilerParams(vmem_limit_bytes=32 * 1024 * 1024),
        cost_estimate=_cost_estimate(N, E, emb_dim, heads, hidden_size,
                                     repr_dim, out_pad),
    )(src_col, dst_col, x,
      params["w1"], a1_dst, a1_src, rep1, params["b1"],
      params["w2"], a2_dst, a2_src, rep2, m2_pad, b2_pad, pad_h)

    return out_padded[:, :repr_dim], att_padded[:, :heads]


# ----------------------------------------------------------------------------
# Pure-JAX reference (same math, f32 HIGHEST) for correctness checking
# ----------------------------------------------------------------------------
def pagat_net_reference(params, x, path_index, *, heads, hidden_size, repr_dim):
    dst = path_index[0].astype(jnp.int32)
    src = path_index[-1].astype(jnp.int32)
    N = x.shape[0]
    hi = jax.lax.Precision.HIGHEST

    def conv(x, w, att, b, out_ch, concat):
        h = jnp.dot(x, w, precision=hi).reshape(N, heads, out_ch)
        h_src, h_dst = h[src], h[dst]
        a_dst, a_src = att[:, :out_ch], att[:, out_ch:]
        score = (jnp.einsum("ehc,hc->eh", h_dst, a_dst, precision=hi)
                 + jnp.einsum("ehc,hc->eh", h_src, a_src, precision=hi))
        score = jnp.where(score > 0, score, 0.2 * score)
        e = jnp.exp(score - jnp.max(score, axis=0, keepdims=True))
        denom = jax.ops.segment_sum(e, dst, num_segments=N)
        alpha = e / denom[dst]
        out = jax.ops.segment_sum(alpha[:, :, None] * h_src, dst, num_segments=N)
        if concat:
            return out.reshape(N, heads * out_ch) + b, alpha
        return out.mean(axis=1) + b, alpha

    h1, _ = conv(x, params["w1"], params["att1"], params["b1"], hidden_size, True)
    h1 = jnp.where(h1 > 0, h1, jnp.expm1(jnp.minimum(h1, 0.0)))
    return conv(h1, params["w2"], params["att2"], params["b2"], repr_dim, False)


# ----------------------------------------------------------------------------
# Parameter init
# ----------------------------------------------------------------------------
def glorot(key, shape):
    fan_in, fan_out = shape[-2], shape[-1]
    limit = jnp.sqrt(6.0 / (fan_in + fan_out))
    return jax.random.uniform(key, shape, jnp.float32, -limit, limit)


def init_params(key, emb_dim, hidden_size, repr_dim, heads):
    k1, k2, k3, k4 = jax.random.split(key, 4)
    return {
        # conv1: in=emb_dim, out=hidden_size per head, concat
        "w1": glorot(k1, (emb_dim, heads * hidden_size)),
        "att1": glorot(k2, (heads, 2 * hidden_size)),
        "b1": jnp.zeros((1, heads * hidden_size), jnp.float32),
        # conv2: in=heads*hidden_size, out=repr_dim per head, mean
        "w2": glorot(k3, (heads * hidden_size, heads * repr_dim)),
        "att2": glorot(k4, (heads, 2 * repr_dim)),
        "b2": jnp.zeros((1, repr_dim), jnp.float32),
    }


if __name__ == "__main__":
    # Small, deterministic problem.
    NUM_NODES = 16
    EMB_DIM = 8
    HIDDEN = 16
    REPR_DIM = 8
    HEADS = 2
    NUM_PATHS = 8

    root = jax.random.PRNGKey(0)
    k_param, k_x, k_path = jax.random.split(root, 3)

    params = init_params(k_param, EMB_DIM, HIDDEN, REPR_DIM, HEADS)
    x = jax.random.normal(k_x, (NUM_NODES, EMB_DIM), jnp.float32)
    path_index = jax.random.randint(k_path, (2, NUM_PATHS), 0, NUM_NODES,
                                    dtype=jnp.int32)

    fwd = jax.jit(functools.partial(pagat_net_forward, heads=HEADS,
                                    hidden_size=HIDDEN, repr_dim=REPR_DIM))
    out, att = fwd(params, x, path_index)
    jax.block_until_ready((out, att))

    assert out.shape == (NUM_NODES, REPR_DIM)
    assert att.shape == (NUM_PATHS, HEADS)
    assert bool(jnp.all(jnp.isfinite(out)))
    assert bool(jnp.all(jnp.isfinite(att)))

    # Correctness check against the plain-JAX f32 reference (kernel uses bf16
    # MXU operands with f32 accumulation, hence the slightly looser tolerance).
    ref_out, ref_att = pagat_net_reference(params, x, path_index, heads=HEADS,
                                           hidden_size=HIDDEN, repr_dim=REPR_DIM)
    assert bool(jnp.allclose(out, ref_out, rtol=5e-2, atol=5e-2))
    assert bool(jnp.allclose(att, ref_att, rtol=5e-2, atol=5e-2))

    print("KERNEL_OK")
</pallas_src>

<mosaic_0001>
module attributes {stable_mosaic.version = 11 : i64} {
  func.func @pagat_net_kernel(%arg0: memref<8x1xi32, #tpu.memory_space<vmem>>, %arg1: memref<8x1xi32, #tpu.memory_space<vmem>>, %arg2: memref<16x8xf32, #tpu.memory_space<vmem>>, %arg3: memref<8x32xf32, #tpu.memory_space<vmem>>, %arg4: memref<32x2xf32, #tpu.memory_space<vmem>>, %arg5: memref<32x2xf32, #tpu.memory_space<vmem>>, %arg6: memref<2x32xf32, #tpu.memory_space<vmem>>, %arg7: memref<1x32xf32, #tpu.memory_space<vmem>>, %arg8: memref<32x16xf32, #tpu.memory_space<vmem>>, %arg9: memref<16x2xf32, #tpu.memory_space<vmem>>, %arg10: memref<16x2xf32, #tpu.memory_space<vmem>>, %arg11: memref<2x16xf32, #tpu.memory_space<vmem>>, %arg12: memref<16x128xf32, #tpu.memory_space<vmem>>, %arg13: memref<1x128xf32, #tpu.memory_space<vmem>>, %arg14: memref<2x128xf32, #tpu.memory_space<vmem>>, %arg15: memref<16x128xf32, #tpu.memory_space<vmem>>, %arg16: memref<8x128xf32, #tpu.memory_space<vmem>>) attributes {dimension_semantics = [], scalar_prefetch = 0 : i64, scratch_operands = 0 : i64, tpu.core_type = #tpu.core_type<tc>} {
    %0 = tpu.iota {dimensions = array<i32: 1>} : vector<8x16xi32>
    %c0 = arith.constant 0 : index
    %c0_0 = arith.constant 0 : index
    %1 = vector.load %arg0[%c0, %c0_0] : memref<8x1xi32, #tpu.memory_space<vmem>>, vector<8x1xi32>
    %2 = vector.broadcast %1 : vector<8x1xi32> to vector<8x16xi32>
    %3 = arith.cmpi eq, %0, %2 : vector<8x16xi32>
    %4 = arith.extui %3 : vector<8x16xi1> to vector<8x16xi32>
    %5 = arith.sitofp %4 : vector<8x16xi32> to vector<8x16xf32>
    %6 = arith.truncf %5 : vector<8x16xf32> to vector<8x16xbf16>
    %c0_1 = arith.constant 0 : index
    %c0_2 = arith.constant 0 : index
    %7 = vector.load %arg1[%c0_1, %c0_2] : memref<8x1xi32, #tpu.memory_space<vmem>>, vector<8x1xi32>
    %8 = vector.broadcast %7 : vector<8x1xi32> to vector<8x16xi32>
    %9 = arith.cmpi eq, %0, %8 : vector<8x16xi32>
    %10 = arith.extui %9 : vector<8x16xi1> to vector<8x16xi32>
    %11 = arith.sitofp %10 : vector<8x16xi32> to vector<8x16xf32>
    %12 = arith.truncf %11 : vector<8x16xf32> to vector<8x16xbf16>
    %c0_3 = arith.constant 0 : index
    %c0_4 = arith.constant 0 : index
    %13 = vector.load %arg2[%c0_3, %c0_4] : memref<16x8xf32, #tpu.memory_space<vmem>>, vector<16x8xf32>
    %14 = arith.truncf %13 : vector<16x8xf32> to vector<16x8xbf16>
    %c0_5 = arith.constant 0 : index
    %c0_6 = arith.constant 0 : index
    %15 = vector.load %arg3[%c0_5, %c0_6] : memref<8x32xf32, #tpu.memory_space<vmem>>, vector<8x32xf32>
    %16 = arith.truncf %15 : vector<8x32xf32> to vector<8x32xbf16>
    %c0_7 = arith.constant 0 : index
    %c0_8 = arith.constant 0 : index
    %17 = vector.load %arg4[%c0_7, %c0_8] : memref<32x2xf32, #tpu.memory_space<vmem>>, vector<32x2xf32>
    %c0_9 = arith.constant 0 : index
    %c0_10 = arith.constant 0 : index
    %18 = vector.load %arg5[%c0_9, %c0_10] : memref<32x2xf32, #tpu.memory_space<vmem>>, vector<32x2xf32>
    %c0_11 = arith.constant 0 : index
    %c0_12 = arith.constant 0 : index
    %19 = vector.load %arg6[%c0_11, %c0_12] : memref<2x32xf32, #tpu.memory_space<vmem>>, vector<2x32xf32>
    %cst = arith.constant dense<0.000000e+00> : vector<16x32xf32>
    %20 = tpu.matmul %14, %16, %cst {dimension_numbers = #tpu.dot_dimension_numbers<[1], [0], [0], [1], [0, 0, 1, 1], [], []>} : vector<16x8xbf16>, vector<8x32xbf16>, vector<16x32xf32> -> vector<16x32xf32>
    %21 = arith.truncf %20 : vector<16x32xf32> to vector<16x32xbf16>
    %22 = arith.truncf %19 : vector<2x32xf32> to vector<2x32xbf16>
    %23 = arith.truncf %17 : vector<32x2xf32> to vector<32x2xbf16>
    %cst_13 = arith.constant dense<0.000000e+00> : vector<16x2xf32>
    %24 = tpu.matmul %21, %23, %cst_13 {dimension_numbers = #tpu.dot_dimension_numbers<[1], [0], [0], [1], [0, 0, 1, 1], [], []>} : vector<16x32xbf16>, vector<32x2xbf16>, vector<16x2xf32> -> vector<16x2xf32>
    %25 = arith.truncf %24 : vector<16x2xf32> to vector<16x2xbf16>
    %26 = arith.truncf %18 : vector<32x2xf32> to vector<32x2xbf16>
    %cst_14 = arith.constant dense<0.000000e+00> : vector<16x2xf32>
    %27 = tpu.matmul %21, %26, %cst_14 {dimension_numbers = #tpu.dot_dimension_numbers<[1], [0], [0], [1], [0, 0, 1, 1], [], []>} : vector<16x32xbf16>, vector<32x2xbf16>, vector<16x2xf32> -> vector<16x2xf32>
    %28 = arith.truncf %27 : vector<16x2xf32> to vector<16x2xbf16>
    %cst_15 = arith.constant dense<0.000000e+00> : vector<8x2xf32>
    %29 = tpu.matmul %12, %25, %cst_15 {dimension_numbers = #tpu.dot_dimension_numbers<[1], [0], [0], [1], [0, 0, 1, 1], [], []>} : vector<8x16xbf16>, vector<16x2xbf16>, vector<8x2xf32> -> vector<8x2xf32>
    %cst_16 = arith.constant dense<0.000000e+00> : vector<8x2xf32>
    %30 = tpu.matmul %6, %28, %cst_16 {dimension_numbers = #tpu.dot_dimension_numbers<[1], [0], [0], [1], [0, 0, 1, 1], [], []>} : vector<8x16xbf16>, vector<16x2xbf16>, vector<8x2xf32> -> vector<8x2xf32>
    %31 = arith.addf %29, %30 : vector<8x2xf32>
    %cst_17 = arith.constant 0.000000e+00 : f32
    %32 = vector.broadcast %cst_17 : f32 to vector<8x2xf32>
    %33 = arith.cmpf ogt, %31, %32 : vector<8x2xf32>
    %cst_18 = arith.constant 2.000000e-01 : f32
    %34 = vector.broadcast %cst_18 : f32 to vector<8x2xf32>
    %35 = arith.mulf %34, %31 : vector<8x2xf32>
    %36 = arith.select %33, %31, %35 : vector<8x2xi1>, vector<8x2xf32>
    %cst_19 = arith.constant dense<0xFF800000> : vector<2xf32>
    %37 = vector.multi_reduction <maximumf>, %36, %cst_19 [0] : vector<8x2xf32> to vector<2xf32>
    %38 = vector.shape_cast %37 : vector<2xf32> to vector<1x2xf32>
    %39 = vector.broadcast %38 : vector<1x2xf32> to vector<8x2xf32>
    %40 = arith.subf %36, %39 : vector<8x2xf32>
    %41 = math.exp %40 : vector<8x2xf32>
    %42 = arith.truncf %41 : vector<8x2xf32> to vector<8x2xbf16>
    %cst_20 = arith.constant dense<0.000000e+00> : vector<8x32xf32>
    %43 = tpu.matmul %6, %21, %cst_20 {dimension_numbers = #tpu.dot_dimension_numbers<[1], [0], [0], [1], [0, 0, 1, 1], [], []>} : vector<8x16xbf16>, vector<16x32xbf16>, vector<8x32xf32> -> vector<8x32xf32>
    %cst_21 = arith.constant dense<0.000000e+00> : vector<16x2xf32>
    %44 = tpu.matmul %12, %42, %cst_21 {dimension_numbers = #tpu.dot_dimension_numbers<[0], [0], [1], [1], [0, 1, 1, 1], [], []>} : vector<8x16xbf16>, vector<8x2xbf16>, vector<16x2xf32> -> vector<16x2xf32>
    %cst_22 = arith.constant dense<0.000000e+00> : vector<8x32xf32>
    %45 = tpu.matmul %42, %22, %cst_22 {dimension_numbers = #tpu.dot_dimension_numbers<[1], [0], [0], [1], [0, 0, 1, 1], [], []>} : vector<8x2xbf16>, vector<2x32xbf16>, vector<8x32xf32> -> vector<8x32xf32>
    %46 = arith.mulf %43, %45 : vector<8x32xf32>
    %47 = arith.truncf %46 : vector<8x32xf32> to vector<8x32xbf16>
    %cst_23 = arith.constant dense<0.000000e+00> : vector<16x32xf32>
    %48 = tpu.matmul %12, %47, %cst_23 {dimension_numbers = #tpu.dot_dimension_numbers<[0], [0], [1], [1], [0, 1, 1, 1], [], []>} : vector<8x16xbf16>, vector<8x32xbf16>, vector<16x32xf32> -> vector<16x32xf32>
    %49 = arith.truncf %44 : vector<16x2xf32> to vector<16x2xbf16>
    %cst_24 = arith.constant dense<0.000000e+00> : vector<16x32xf32>
    %50 = tpu.matmul %49, %22, %cst_24 {dimension_numbers = #tpu.dot_dimension_numbers<[1], [0], [0], [1], [0, 0, 1, 1], [], []>} : vector<16x2xbf16>, vector<2x32xbf16>, vector<16x32xf32> -> vector<16x32xf32>
    %cst_25 = arith.constant 1.000000e-30 : f32
    %51 = vector.broadcast %cst_25 : f32 to vector<16x32xf32>
    %52 = arith.maximumf %50, %51 : vector<16x32xf32>
    %53 = arith.divf %48, %52 : vector<16x32xf32>
    %c0_26 = arith.constant 0 : index
    %c0_27 = arith.constant 0 : index
    %54 = vector.load %arg7[%c0_26, %c0_27] : memref<1x32xf32, #tpu.memory_space<vmem>>, vector<1x32xf32>
    %55 = vector.broadcast %54 : vector<1x32xf32> to vector<16x32xf32>
    %56 = arith.addf %53, %55 : vector<16x32xf32>
    %cst_28 = arith.constant 0.000000e+00 : f32
    %57 = vector.broadcast %cst_28 : f32 to vector<16x32xf32>
    %58 = arith.cmpf ogt, %56, %57 : vector<16x32xf32>
    %cst_29 = arith.constant 0.000000e+00 : f32
    %59 = vector.broadcast %cst_29 : f32 to vector<16x32xf32>
    %60 = arith.minimumf %56, %59 : vector<16x32xf32>
    %61 = math.exp %60 : vector<16x32xf32>
    %cst_30 = arith.constant 1.000000e+00 : f32
    %62 = vector.broadcast %cst_30 : f32 to vector<16x32xf32>
    %63 = arith.subf %61, %62 : vector<16x32xf32>
    %64 = arith.select %58, %56, %63 : vector<16x32xi1>, vector<16x32xf32>
    %65 = arith.truncf %64 : vector<16x32xf32> to vector<16x32xbf16>
    %c0_31 = arith.constant 0 : index
    %c0_32 = arith.constant 0 : index
    %66 = vector.load %arg8[%c0_31, %c0_32] : memref<32x16xf32, #tpu.memory_space<vmem>>, vector<32x16xf32>
    %67 = arith.truncf %66 : vector<32x16xf32> to vector<32x16xbf16>
    %c0_33 = arith.constant 0 : index
    %c0_34 = arith.constant 0 : index
    %68 = vector.load %arg9[%c0_33, %c0_34] : memref<16x2xf32, #tpu.memory_space<vmem>>, vector<16x2xf32>
    %c0_35 = arith.constant 0 : index
    %c0_36 = arith.constant 0 : index
    %69 = vector.load %arg10[%c0_35, %c0_36] : memref<16x2xf32, #tpu.memory_space<vmem>>, vector<16x2xf32>
    %c0_37 = arith.constant 0 : index
    %c0_38 = arith.constant 0 : index
    %70 = vector.load %arg11[%c0_37, %c0_38] : memref<2x16xf32, #tpu.memory_space<vmem>>, vector<2x16xf32>
    %cst_39 = arith.constant dense<0.000000e+00> : vector<16x16xf32>
    %71 = tpu.matmul %65, %67, %cst_39 {dimension_numbers = #tpu.dot_dimension_numbers<[1], [0], [0], [1], [0, 0, 1, 1], [], []>} : vector<16x32xbf16>, vector<32x16xbf16>, vector<16x16xf32> -> vector<16x16xf32>
    %72 = arith.truncf %71 : vector<16x16xf32> to vector<16x16xbf16>
    %73 = arith.truncf %70 : vector<2x16xf32> to vector<2x16xbf16>
    %74 = arith.truncf %68 : vector<16x2xf32> to vector<16x2xbf16>
    %cst_40 = arith.constant dense<0.000000e+00> : vector<16x2xf32>
    %75 = tpu.matmul %72, %74, %cst_40 {dimension_numbers = #tpu.dot_dimension_numbers<[1], [0], [0], [1], [0, 0, 1, 1], [], []>} : vector<16x16xbf16>, vector<16x2xbf16>, vector<16x2xf32> -> vector<16x2xf32>
    %76 = arith.truncf %75 : vector<16x2xf32> to vector<16x2xbf16>
    %77 = arith.truncf %69 : vector<16x2xf32> to vector<16x2xbf16>
    %cst_41 = arith.constant dense<0.000000e+00> : vector<16x2xf32>
    %78 = tpu.matmul %72, %77, %cst_41 {dimension_numbers = #tpu.dot_dimension_numbers<[1], [0], [0], [1], [0, 0, 1, 1], [], []>} : vector<16x16xbf16>, vector<16x2xbf16>, vector<16x2xf32> -> vector<16x2xf32>
    %79 = arith.truncf %78 : vector<16x2xf32> to vector<16x2xbf16>
    %cst_42 = arith.constant dense<0.000000e+00> : vector<8x2xf32>
    %80 = tpu.matmul %12, %76, %cst_42 {dimension_numbers = #tpu.dot_dimension_numbers<[1], [0], [0], [1], [0, 0, 1, 1], [], []>} : vector<8x16xbf16>, vector<16x2xbf16>, vector<8x2xf32> -> vector<8x2xf32>
    %cst_43 = arith.constant dense<0.000000e+00> : vector<8x2xf32>
    %81 = tpu.matmul %6, %79, %cst_43 {dimension_numbers = #tpu.dot_dimension_numbers<[1], [0], [0], [1], [0, 0, 1, 1], [], []>} : vector<8x16xbf16>, vector<16x2xbf16>, vector<8x2xf32> -> vector<8x2xf32>
    %82 = arith.addf %80, %81 : vector<8x2xf32>
    %cst_44 = arith.constant 0.000000e+00 : f32
    %83 = vector.broadcast %cst_44 : f32 to vector<8x2xf32>
    %84 = arith.cmpf ogt, %82, %83 : vector<8x2xf32>
    %cst_45 = arith.constant 2.000000e-01 : f32
    %85 = vector.broadcast %cst_45 : f32 to vector<8x2xf32>
    %86 = arith.mulf %85, %82 : vector<8x2xf32>
    %87 = arith.select %84, %82, %86 : vector<8x2xi1>, vector<8x2xf32>
    %cst_46 = arith.constant dense<0xFF800000> : vector<2xf32>
    %88 = vector.multi_reduction <maximumf>, %87, %cst_46 [0] : vector<8x2xf32> to vector<2xf32>
    %89 = vector.shape_cast %88 : vector<2xf32> to vector<1x2xf32>
    %90 = vector.broadcast %89 : vector<1x2xf32> to vector<8x2xf32>
    %91 = arith.subf %87, %90 : vector<8x2xf32>
    %92 = math.exp %91 : vector<8x2xf32>
    %93 = arith.truncf %92 : vector<8x2xf32> to vector<8x2xbf16>
    %cst_47 = arith.constant dense<0.000000e+00> : vector<8x16xf32>
    %94 = tpu.matmul %6, %72, %cst_47 {dimension_numbers = #tpu.dot_dimension_numbers<[1], [0], [0], [1], [0, 0, 1, 1], [], []>} : vector<8x16xbf16>, vector<16x16xbf16>, vector<8x16xf32> -> vector<8x16xf32>
    %cst_48 = arith.constant dense<0.000000e+00> : vector<16x2xf32>
    %95 = tpu.matmul %12, %93, %cst_48 {dimension_numbers = #tpu.dot_dimension_numbers<[0], [0], [1], [1], [0, 1, 1, 1], [], []>} : vector<8x16xbf16>, vector<8x2xbf16>, vector<16x2xf32> -> vector<16x2xf32>
    %96 = arith.truncf %95 : vector<16x2xf32> to vector<16x2xbf16>
    %cst_49 = arith.constant dense<0.000000e+00> : vector<8x2xf32>
    %97 = tpu.matmul %12, %96, %cst_49 {dimension_numbers = #tpu.dot_dimension_numbers<[1], [0], [0], [1], [0, 0, 1, 1], [], []>} : vector<8x16xbf16>, vector<16x2xbf16>, vector<8x2xf32> -> vector<8x2xf32>
    %cst_50 = arith.constant 1.000000e-30 : f32
    %98 = vector.broadcast %cst_50 : f32 to vector<8x2xf32>
    %99 = arith.maximumf %97, %98 : vector<8x2xf32>
    %100 = arith.divf %92, %99 : vector<8x2xf32>
    %101 = arith.truncf %100 : vector<8x2xf32> to vector<8x2xbf16>
    %cst_51 = arith.constant dense<0.000000e+00> : vector<8x16xf32>
    %102 = tpu.matmul %101, %73, %cst_51 {dimension_numbers = #tpu.dot_dimension_numbers<[1], [0], [0], [1], [0, 0, 1, 1], [], []>} : vector<8x2xbf16>, vector<2x16xbf16>, vector<8x16xf32> -> vector<8x16xf32>
    %103 = arith.mulf %94, %102 : vector<8x16xf32>
    %104 = arith.truncf %103 : vector<8x16xf32> to vector<8x16xbf16>
    %cst_52 = arith.constant dense<0.000000e+00> : vector<16x16xf32>
    %105 = tpu.matmul %12, %104, %cst_52 {dimension_numbers = #tpu.dot_dimension_numbers<[0], [0], [1], [1], [0, 1, 1, 1], [], []>} : vector<8x16xbf16>, vector<8x16xbf16>, vector<16x16xf32> -> vector<16x16xf32>
    %106 = arith.truncf %105 : vector<16x16xf32> to vector<16x16xbf16>
    %c0_53 = arith.constant 0 : index
    %c0_54 = arith.constant 0 : index
    %107 = vector.load %arg12[%c0_53, %c0_54] : memref<16x128xf32, #tpu.memory_space<vmem>>, vector<16x128xf32>
    %108 = arith.truncf %107 : vector<16x128xf32> to vector<16x128xbf16>
    %cst_55 = arith.constant dense<0.000000e+00> : vector<16x128xf32>
    %109 = tpu.matmul %106, %108, %cst_55 {dimension_numbers = #tpu.dot_dimension_numbers<[1], [0], [0], [1], [0, 0, 1, 1], [], []>} : vector<16x16xbf16>, vector<16x128xbf16>, vector<16x128xf32> -> vector<16x128xf32>
    %c0_56 = arith.constant 0 : index
    %c0_57 = arith.constant 0 : index
    %110 = vector.load %arg13[%c0_56, %c0_57] : memref<1x128xf32, #tpu.memory_space<vmem>>, vector<1x128xf32>
    %111 = vector.broadcast %110 : vector<1x128xf32> to vector<16x128xf32>
    %112 = arith.addf %109, %111 : vector<16x128xf32>
    %c0_58 = arith.constant 0 : index
    %c0_59 = arith.constant 0 : index
    %113 = vector.load %arg15[%c0_58, %c0_59] : memref<16x128xf32, #tpu.memory_space<vmem>>, vector<16x128xf32>
    tpu.vector_store %arg15[%c0_58, %c0_59], %112 {strides = array<i32>} : memref<16x128xf32, #tpu.memory_space<vmem>>, vector<16x128xf32>,
    %114 = arith.truncf %100 : vector<8x2xf32> to vector<8x2xbf16>
    %c0_60 = arith.constant 0 : index
    %c0_61 = arith.constant 0 : index
    %115 = vector.load %arg14[%c0_60, %c0_61] : memref<2x128xf32, #tpu.memory_space<vmem>>, vector<2x128xf32>
    %116 = arith.truncf %115 : vector<2x128xf32> to vector<2x128xbf16>
    %cst_62 = arith.constant dense<0.000000e+00> : vector<8x128xf32>
    %117 = tpu.matmul %114, %116, %cst_62 {dimension_numbers = #tpu.dot_dimension_numbers<[1], [0], [0], [1], [0, 0, 1, 1], [], []>} : vector<8x2xbf16>, vector<2x128xbf16>, vector<8x128xf32> -> vector<8x128xf32>
    %c0_63 = arith.constant 0 : index
    %c0_64 = arith.constant 0 : index
    %118 = vector.load %arg16[%c0_63, %c0_64] : memref<8x128xf32, #tpu.memory_space<vmem>>, vector<8x128xf32>
    tpu.vector_store %arg16[%c0_63, %c0_64], %117 {strides = array<i32>} : memref<8x128xf32, #tpu.memory_space<vmem>>, vector<8x128xf32>,
    return
  }
}

</mosaic_0001>

<llo_original>
// kernel: pagat_net_forward.1
$region0: #{pagat_net_forward.1}
  #allocation0 [shape = 'u32[]', space=smem, size = 0x4, offset = 0x4, fixed_abs, tag = 'smem constant byte address 0x4 - core index']
  #allocation1 [shape = 'u32[144,128]{1,0:T(1,128)}', space=vmem, size = 0x12000, scoped, tag = 'internal scratch']
  %s0 = inlined_call_operand.vmem [shape: s32[8,1], index: 0, kind: input, shape index: {}]
  %s1 = inlined_call_operand.vmem [shape: s32[8,1], index: 1, kind: input, shape index: {}]
  %s2 = inlined_call_operand.vmem [shape: f32[16,8], index: 2, kind: input, shape index: {}]
  %s3 = inlined_call_operand.vmem [shape: f32[8,32], index: 3, kind: input, shape index: {}]
  %s4 = inlined_call_operand.vmem [shape: f32[32,2], index: 4, kind: input, shape index: {}]
  %s5 = inlined_call_operand.vmem [shape: f32[32,2], index: 5, kind: input, shape index: {}]
  %s6 = inlined_call_operand.vmem [shape: f32[2,32], index: 6, kind: input, shape index: {}]
  %s7 = inlined_call_operand.vmem [shape: f32[1,32], index: 7, kind: input, shape index: {}]
  %s8 = inlined_call_operand.vmem [shape: f32[32,16], index: 8, kind: input, shape index: {}]
  %s9 = inlined_call_operand.vmem [shape: f32[16,2], index: 9, kind: input, shape index: {}]
  %s10 = inlined_call_operand.vmem [shape: f32[16,2], index: 10, kind: input, shape index: {}]
  %s11 = inlined_call_operand.vmem [shape: f32[2,16], index: 11, kind: input, shape index: {}]
  %s12 = inlined_call_operand.vmem [shape: f32[16,128], index: 12, kind: input, shape index: {}]
  %s13 = inlined_call_operand.vmem [shape: f32[1,128], index: 13, kind: input, shape index: {}]
  %s14 = inlined_call_operand.vmem [shape: f32[2,128], index: 14, kind: input, shape index: {}]
  %s15 = inlined_call_operand.vmem [shape: f32[16,128], index: 15, kind: output, shape index: {0}]
  %s16 = inlined_call_operand.vmem [shape: f32[8,128], index: 16, kind: output, shape index: {1}]
  %17 = xla_tuple %s15, %s16
  %s18 = sld [smem:[#allocation0]]
  $region78: #{pagat_net_forward.1} parent=0
    _
  %s20 = ssub.s32 1, %s18
  %s21 = scalar_select 0, %s20, %s18
  // Predicated region
  $region2: #{pagat_net_forward.1} parent=0 // pred_check
    _
  $region3: #{pagat_net_forward.1} parent=0 // pred_check_branch
    %23 = sbr.rel (0) target = $region5
  $region4: #{pagat_net_forward.1} parent=0 // pred_region
    _
  $region5: #{pagat_net_forward.1} parent=0 // pred_fallthru
    _
  // Predicated region
  $region6: #{pagat_net_forward.1} parent=0 // pred_check
    _
  $region7: #{pagat_net_forward.1} parent=0 // pred_check_branch
    %25 = sbr.rel (0) target = $region9
  $region8: #{pagat_net_forward.1} parent=0 // pred_region
    _
  $region9: #{pagat_net_forward.1} parent=0 // pred_fallthru
    _
  // Predicated region
  $region10: #{pagat_net_forward.1} parent=0 // pred_check
    _
  $region11: #{pagat_net_forward.1} parent=0 // pred_check_branch
    %27 = sbr.rel (0) target = $region13
  $region12: #{pagat_net_forward.1} parent=0 // pred_region
    _
  $region13: #{pagat_net_forward.1} parent=0 // pred_fallthru
    _
  // Predicated region
  $region14: #{pagat_net_forward.1} parent=0 // pred_check
    _
  $region15: #{pagat_net_forward.1} parent=0 // pred_check_branch
    %29 = sbr.rel (0) target = $region17
  $region16: #{pagat_net_forward.1} parent=0 // pred_region
    _
  $region17: #{pagat_net_forward.1} parent=0 // pred_fallthru
    _
  // Predicated region
  $region18: #{pagat_net_forward.1} parent=0 // pred_check
    _
  $region19: #{pagat_net_forward.1} parent=0 // pred_check_branch
    %31 = sbr.rel (0) target = $region21
  $region20: #{pagat_net_forward.1} parent=0 // pred_region
    _
  $region21: #{pagat_net_forward.1} parent=0 // pred_fallthru
    _
  // Predicated region
  $region22: #{pagat_net_forward.1} parent=0 // pred_check
    _
  $region23: #{pagat_net_forward.1} parent=0 // pred_check_branch
    %33 = sbr.rel (0) target = $region25
  $region24: #{pagat_net_forward.1} parent=0 // pred_region
    _
  $region25: #{pagat_net_forward.1} parent=0 // pred_fallthru
    _
  // Predicated region
  $region26: #{pagat_net_forward.1} parent=0 // pred_check
    _
  $region27: #{pagat_net_forward.1} parent=0 // pred_check_branch
    %35 = sbr.rel (0) target = $region29
  $region28: #{pagat_net_forward.1} parent=0 // pred_region
    _
  $region29: #{pagat_net_forward.1} parent=0 // pred_fallthru
    _
  // Predicated region
  $region30: #{pagat_net_forward.1} parent=0 // pred_check
    _
  $region31: #{pagat_net_forward.1} parent=0 // pred_check_branch
    %37 = sbr.rel (0) target = $region33
  $region32: #{pagat_net_forward.1} parent=0 // pred_region
    _
  $region33: #{pagat_net_forward.1} parent=0 // pred_fallthru
    _
  // Predicated region
  $region34: #{pagat_net_forward.1} parent=0 // pred_check
    _
  $region35: #{pagat_net_forward.1} parent=0 // pred_check_branch
    %39 = sbr.rel (0) target = $region37
  $region36: #{pagat_net_forward.1} parent=0 // pred_region
    _
  $region37: #{pagat_net_forward.1} parent=0 // pred_fallthru
    _
  // Predicated region
  $region38: #{pagat_net_forward.1} parent=0 // pred_check
    _
  $region39: #{pagat_net_forward.1} parent=0 // pred_check_branch
    %41 = sbr.rel (0) target = $region41
  $region40: #{pagat_net_forward.1} parent=0 // pred_region
    _
  $region41: #{pagat_net_forward.1} parent=0 // pred_fallthru
    _
  // Predicated region
  $region42: #{pagat_net_forward.1} parent=0 // pred_check
    _
  $region43: #{pagat_net_forward.1} parent=0 // pred_check_branch
    %43 = sbr.rel (0) target = $region45
  $region44: #{pagat_net_forward.1} parent=0 // pred_region
    _
  $region45: #{pagat_net_forward.1} parent=0 // pred_fallthru
    _
  // Predicated region
  $region46: #{pagat_net_forward.1} parent=0 // pred_check
    _
  $region47: #{pagat_net_forward.1} parent=0 // pred_check_branch
    %45 = sbr.rel (0) target = $region49
  $region48: #{pagat_net_forward.1} parent=0 // pred_region
    _
  $region49: #{pagat_net_forward.1} parent=0 // pred_fallthru
    _
  // Predicated region
  $region50: #{pagat_net_forward.1} parent=0 // pred_check
    _
  $region51: #{pagat_net_forward.1} parent=0 // pred_check_branch
    %47 = sbr.rel (0) target = $region53
  $region52: #{pagat_net_forward.1} parent=0 // pred_region
    _
  $region53: #{pagat_net_forward.1} parent=0 // pred_fallthru
    _
  // Predicated region
  $region54: #{pagat_net_forward.1} parent=0 // pred_check
    _
  $region55: #{pagat_net_forward.1} parent=0 // pred_check_branch
    %49 = sbr.rel (0) target = $region57
  $region56: #{pagat_net_forward.1} parent=0 // pred_region
    _
  $region57: #{pagat_net_forward.1} parent=0 // pred_fallthru
    _
  // Predicated region
  $region58: #{pagat_net_forward.1} parent=0 // pred_check
    _
  $region59: #{pagat_net_forward.1} parent=0 // pred_check_branch
    %51 = sbr.rel (0) target = $region61
  $region60: #{pagat_net_forward.1} parent=0 // pred_region
    _
  $region61: #{pagat_net_forward.1} parent=0 // pred_fallthru
    _
  %v53 = vlaneseq
  %v54 = vand.u32 %v53, 127
  %v55 = vld [vmem:[%s0] sm:$0xff]
  %56 = vset.pattern.permute.xlu0 0
  %57 = vperm.xlu0 %56, %v55
  %v58 = vpop.permute.xlu0 %57
  %vm59 = vcmp.eq.s32.totalorder %v54, %v58
  %v60 = vsel %vm59, 1, 0
  %v61 = vcvt.s32.f32 %v60
  %v62 = vpack.c.bf16 %v61, %v61
  %v63 = vld [vmem:[%s1] sm:$0xff]
  %64 = vset.pattern.permute.xlu0 0
  %65 = vperm.xlu0 %64, %v63
  %v66 = vpop.permute.xlu0 %65
  %vm67 = vcmp.eq.s32.totalorder %v54, %v66
  %v68 = vsel %vm67, 1, 0
  %v69 = vcvt.s32.f32 %v68
  %v70 = vpack.c.bf16 %v69, %v69
  %v71 = vld [vmem:[%s2] sm:$0xff]
  %v72 = vld [vmem:[%s2 + $0x8] sm:$0xff]
  %v73 = vpack.c.bf16 %v72, %v71
  %v74 = vld [vmem:[%s3] sm:$0xff]
  %v75 = vpack.c.bf16 %v74, %v74
  %v76 = vld [vmem:[%s4] sm:$0xff]
  %v77 = vld [vmem:[%s4 + $0x8] sm:$0xff]
  %v78 = vld [vmem:[%s4 + $0x10] sm:$0xff]
  %v79 = vld [vmem:[%s4 + $0x18] sm:$0xff]
  %v80 = vld [vmem:[%s5] sm:$0xff]
  %v81 = vld [vmem:[%s5 + $0x8] sm:$0xff]
  %v82 = vld [vmem:[%s5 + $0x10] sm:$0xff]
  %v83 = vld [vmem:[%s5 + $0x18] sm:$0xff]
  %v84 = vld [vmem:[%s6] sm:$0x3]
  %vm85 = vcmask 64512
  %v87 = vsel %vm85, %v73, 0
  %vm89 = vcmask 1043456
  %v91 = vsel %vm89, %v75, 0
  %93 = vmatprep.subr.bf16.mxu0 0
  %94 = vmatpush1.bf16.msra.mxu0 %v91
  %95 = vmatprep.subr.bf16.mxu0 0
  %96 = vmatpush1.bf16.msra.mxu0 0
  %97 = vmatprep.subr.bf16.mxu0 0
  %98 = vmatpush1.bf16.msra.mxu0 0
  %99 = vmatprep.subr.bf16.mxu0 0
  %100 = vmatpush1.bf16.msra.mxu0 0
  %101 = vmatprep.subr.bf16.mxu0 0
  %102 = vmatpush1.bf16.msra.mxu0 0
  %103 = vmatprep.subr.bf16.mxu0 0
  %104 = vmatpush1.bf16.msra.mxu0 0
  %105 = vmatprep.subr.bf16.mxu0 0
  %106 = vmatpush1.bf16.msra.mxu0 0
  %107 = vmatprep.subr.bf16.mxu0 0
  %108 = vmatpush1.bf16.msra.mxu0 0
  %109 = vmatprep.subr.bf16.mxu0 0
  %110 = vmatpush1.bf16.msra.mxu0 0
  %111 = vmatprep.subr.bf16.mxu0 0
  %112 = vmatpush1.bf16.msra.mxu0 0
  %113 = vmatprep.subr.bf16.mxu0 0
  %114 = vmatpush1.bf16.msra.mxu0 0
  %115 = vmatprep.subr.bf16.mxu0 0
  %116 = vmatpush1.bf16.msra.mxu0 0
  %117 = vmatprep.subr.bf16.mxu0 0
  %118 = vmatpush1.bf16.msra.mxu0 0
  %119 = vmatprep.subr.bf16.mxu0 0
  %120 = vmatpush1.bf16.msra.mxu0 0
  %121 = vmatprep.subr.bf16.mxu0 0
  %122 = vmatpush1.bf16.msra.mxu0 0
  %123 = vmatprep.subr.bf16.mxu0 0
  %124 = vmatpush1.bf16.msra.mxu0 0
  %125 = vmatprep.mubr.bf16.mxu0 0
  %126 = vmatmul.mubr.bf16.gmra.mrb[0].mxu0 %v87
  %v127 = vpop.f32.mrb[0].mxu0
  %v128 = vadd.f32 0.0, %v127
  %v129 = vpop.f32.mrb[0].mxu0
  %v130 = vpop.f32.mrb[0].mxu0
  %v131 = vadd.f32 0.0, %v130
  %v132 = vpop.f32.mrb[0].mxu0
  %133 = vdwg.mxu0
  %v134 = vpack.c.bf16 %v131, %v128
  %v135 = vpack.c.bf16 %v84, %v84
  %v136 = vpack.c.bf16 %v77, %v76
  %v137 = vpack.c.bf16 %v79, %v78
  %vm138 = vcmask 261120
  %v140 = vsel %vm138, %v134, 0
  %142 = vmatprep.subr.bf16.mxu0 0
  %143 = vmatpush1.bf16.msra.mxu0 %v136
  %144 = vmatprep.subr.bf16.mxu0 0
  %145 = vmatpush1.bf16.msra.mxu0 %v137
  %146 = vmatprep.subr.bf16.mxu0 0
  %147 = vmatpush1.bf16.msra.mxu0 0
  %148 = vmatprep.subr.bf16.mxu0 0
  %149 = vmatpush1.bf16.msra.mxu0 0
  %150 = vmatprep.subr.bf16.mxu0 0
  %151 = vmatpush1.bf16.msra.mxu0 0
  %152 = vmatprep.subr.bf16.mxu0 0
  %153 = vmatpush1.bf16.msra.mxu0 0
  %154 = vmatprep.subr.bf16.mxu0 0
  %155 = vmatpush1.bf16.msra.mxu0 0
  %156 = vmatprep.subr.bf16.mxu0 0
  %157 = vmatpush1.bf16.msra.mxu0 0
  %158 = vmatprep.subr.bf16.mxu0 0
  %159 = vmatpush1.bf16.msra.mxu0 0
  %160 = vmatprep.subr.bf16.mxu0 0
  %161 = vmatpush1.bf16.msra.mxu0 0
  %162 = vmatprep.subr.bf16.mxu0 0
  %163 = vmatpush1.bf16.msra.mxu0 0
  %164 = vmatprep.subr.bf16.mxu0 0
  %165 = vmatpush1.bf16.msra.mxu0 0
  %166 = vmatprep.subr.bf16.mxu0 0
  %167 = vmatpush1.bf16.msra.mxu0 0
  %168 = vmatprep.subr.bf16.mxu0 0
  %169 = vmatpush1.bf16.msra.mxu0 0
  %170 = vmatprep.subr.bf16.mxu0 0
  %171 = vmatpush1.bf16.msra.mxu0 0
  %172 = vmatprep.subr.bf16.mxu0 0
  %173 = vmatpush1.bf16.msra.mxu0 0
  %174 = vmatprep.mubr.bf16.mxu0 0
  %175 = vmatmul.mubr.bf16.gmra.mrb[0].mxu0 %v140
  %v176 = vpop.f32.mrb[0].mxu0
  %v177 = vadd.f32 0.0, %v176
  %v178 = vpop.f32.mrb[0].mxu0
  %v179 = vpop.f32.mrb[0].mxu0
  %v180 = vadd.f32 0.0, %v179
  %v181 = vpop.f32.mrb[0].mxu0
  %182 = vdwg.mxu0
  %v183 = vpack.c.bf16 %v180, %v177
  %v184 = vpack.c.bf16 %v81, %v80
  %v185 = vpack.c.bf16 %v83, %v82
  %186 = vmatprep.subr.bf16.mxu0 0
  %187 = vmatpush1.bf16.msra.mxu0 %v184
  %188 = vmatprep.subr.bf16.mxu0 0
  %189 = vmatpush1.bf16.msra.mxu0 %v185
  %190 = vmatprep.subr.bf16.mxu0 0
  %191 = vmatpush1.bf16.msra.mxu0 0
  %192 = vmatprep.subr.bf16.mxu0 0
  %193 = vmatpush1.bf16.msra.mxu0 0
  %194 = vmatprep.subr.bf16.mxu0 0
  %195 = vmatpush1.bf16.msra.mxu0 0
  %196 = vmatprep.subr.bf16.mxu0 0
  %197 = vmatpush1.bf16.msra.mxu0 0
  %198 = vmatprep.subr.bf16.mxu0 0
  %199 = vmatpush1.bf16.msra.mxu0 0
  %200 = vmatprep.subr.bf16.mxu0 0
  %201 = vmatpush1.bf16.msra.mxu0 0
  %202 = vmatprep.subr.bf16.mxu0 0
  %203 = vmatpush1.bf16.msra.mxu0 0
  %204 = vmatprep.subr.bf16.mxu0 0
  %205 = vmatpush1.bf16.msra.mxu0 0
  %206 = vmatprep.subr.bf16.mxu0 0
  %207 = vmatpush1.bf16.msra.mxu0 0
  %208 = vmatprep.subr.bf16.mxu0 0
  %209 = vmatpush1.bf16.msra.mxu0 0
  %210 = vmatprep.subr.bf16.mxu0 0
  %211 = vmatpush1.bf16.msra.mxu0 0
  %212 = vmatprep.subr.bf16.mxu0 0
  %213 = vmatpush1.bf16.msra.mxu0 0
  %214 = vmatprep.subr.bf16.mxu0 0
  %215 = vmatpush1.bf16.msra.mxu0 0
  %216 = vmatprep.subr.bf16.mxu0 0
  %217 = vmatpush1.bf16.msra.mxu0 0
  %218 = vmatprep.mubr.bf16.mxu0 0
  %219 = vmatmul.mubr.bf16.gmra.mrb[0].mxu0 %v140
  %v220 = vpop.f32.mrb[0].mxu0
  %v221 = vadd.f32 0.0, %v220
  %v222 = vpop.f32.mrb[0].mxu0
  %v223 = vpop.f32.mrb[0].mxu0
  %v224 = vadd.f32 0.0, %v223
  %v225 = vpop.f32.mrb[0].mxu0
  %226 = vdwg.mxu0
  %v227 = vpack.c.bf16 %v224, %v221
  %vm228 = vcmask 130048
  %v230 = vsel %vm228, %v62, 0
  %232 = vmatprep.subr.bf16.mxu0 0
  %233 = vmatpush1.bf16.msra.mxu0 %v227
  %234 = vmatprep.subr.bf16.mxu0 0
  %235 = vmatpush1.bf16.msra.mxu0 0
  %236 = vmatprep.subr.bf16.mxu0 0
  %237 = vmatpush1.bf16.msra.mxu0 0
  %238 = vmatprep.subr.bf16.mxu0 0
  %239 = vmatpush1.bf16.msra.mxu0 0
  %240 = vmatprep.subr.bf16.mxu0 0
  %241 = vmatpush1.bf16.msra.mxu0 0
  %242 = vmatprep.subr.bf16.mxu0 0
  %243 = vmatpush1.bf16.msra.mxu0 0
  %244 = vmatprep.subr.bf16.mxu0 0
  %245 = vmatpush1.bf16.msra.mxu0 0
  %246 = vmatprep.subr.bf16.mxu0 0
  %247 = vmatpush1.bf16.msra.mxu0 0
  %248 = vmatprep.subr.bf16.mxu0 0
  %249 = vmatpush1.bf16.msra.mxu0 0
  %250 = vmatprep.subr.bf16.mxu0 0
  %251 = vmatpush1.bf16.msra.mxu0 0
  %252 = vmatprep.subr.bf16.mxu0 0
  %253 = vmatpush1.bf16.msra.mxu0 0
  %254 = vmatprep.subr.bf16.mxu0 0
  %255 = vmatpush1.bf16.msra.mxu0 0
  %256 = vmatprep.subr.bf16.mxu0 0
  %257 = vmatpush1.bf16.msra.mxu0 0
  %258 = vmatprep.subr.bf16.mxu0 0
  %259 = vmatpush1.bf16.msra.mxu0 0
  %260 = vmatprep.subr.bf16.mxu0 0
  %261 = vmatpush1.bf16.msra.mxu0 0
  %262 = vmatprep.subr.bf16.mxu0 0
  %263 = vmatpush1.bf16.msra.mxu0 0
  %264 = vmatprep.mubr.bf16.mxu0 0
  %265 = vmatmul.mubr.bf16.gmra.mrb[0].mxu0 %v230
  %v266 = vpop.f32.mrb[0].mxu0
  %v267 = vadd.f32 0.0, %v266
  %v268 = vpop.f32.mrb[0].mxu0
  %v269 = vpop.f32.mrb[0].mxu0
  %v270 = vpop.f32.mrb[0].mxu0
  %271 = vdwg.mxu0
  %v273 = vsel %vm228, %v70, 0
  %275 = vmatprep.subr.bf16.mxu0 0
  %276 = vmatpush1.bf16.msra.mxu0 %v183
  %277 = vmatprep.subr.bf16.mxu0 0
  %278 = vmatpush1.bf16.msra.mxu0 0
  %279 = vmatprep.subr.bf16.mxu0 0
  %280 = vmatpush1.bf16.msra.mxu0 0
  %281 = vmatprep.subr.bf16.mxu0 0
  %282 = vmatpush1.bf16.msra.mxu0 0
  %283 = vmatprep.subr.bf16.mxu0 0
  %284 = vmatpush1.bf16.msra.mxu0 0
  %285 = vmatprep.subr.bf16.mxu0 0
  %286 = vmatpush1.bf16.msra.mxu0 0
  %287 = vmatprep.subr.bf16.mxu0 0
  %288 = vmatpush1.bf16.msra.mxu0 0
  %289 = vmatprep.subr.bf16.mxu0 0
  %290 = vmatpush1.bf16.msra.mxu0 0
  %291 = vmatprep.subr.bf16.mxu0 0
  %292 = vmatpush1.bf16.msra.mxu0 0
  %293 = vmatprep.subr.bf16.mxu0 0
  %294 = vmatpush1.bf16.msra.mxu0 0
  %295 = vmatprep.subr.bf16.mxu0 0
  %296 = vmatpush1.bf16.msra.mxu0 0
  %297 = vmatprep.subr.bf16.mxu0 0
  %298 = vmatpush1.bf16.msra.mxu0 0
  %299 = vmatprep.subr.bf16.mxu0 0
  %300 = vmatpush1.bf16.msra.mxu0 0
  %301 = vmatprep.subr.bf16.mxu0 0
  %302 = vmatpush1.bf16.msra.mxu0 0
  %303 = vmatprep.subr.bf16.mxu0 0
  %304 = vmatpush1.bf16.msra.mxu0 0
  %305 = vmatprep.subr.bf16.mxu0 0
  %306 = vmatpush1.bf16.msra.mxu0 0
  %307 = vmatprep.mubr.bf16.mxu0 0
  %308 = vmatmul.mubr.bf16.gmra.mrb[0].mxu0 %v273
  %v309 = vpop.f32.mrb[0].mxu0
  %v310 = vadd.f32 %v267, %v309
  %v311 = vpop.f32.mrb[0].mxu0
  %v312 = vpop.f32.mrb[0].mxu0
  %v313 = vpop.f32.mrb[0].mxu0
  %314 = vdwg.mxu0
  %vm315 = vcmp.gt.f32.partialorder %v310, 0.0
  %v316 = vmul.f32 %v310, 0.2
  %v317 = vsel %vm315, %v310, %v316
  %vm318 = vcmask 15360
  %v319 = vsel %vm318, %v317, -inf
  %v320 = vrot.slane %v319, 4
  %v321 = vmax.f32 %v319, %v320
  %v322 = vrot.slane %v321, 2
  %v323 = vmax.f32 %v321, %v322
  %v324 = vrot.slane %v323, 1
  %v325 = vmax.f32 %v323, %v324
  %v326 = vsub.f32 %v317, %v325
  %v327 = vmul.f32 %v326, 1.442695
  %v328 = vpow.pop %v327
  %v329 = vpack.c.bf16 %v328, %v328
  %330 = vmatprep.subr.bf16.mxu0 0
  %331 = vmatpush1.bf16.msra.mxu0 %v134
  %332 = vmatprep.subr.bf16.mxu0 0
  %333 = vmatpush1.bf16.msra.mxu0 0
  %334 = vmatprep.subr.bf16.mxu0 0
  %335 = vmatpush1.bf16.msra.mxu0 0
  %336 = vmatprep.subr.bf16.mxu0 0
  %337 = vmatpush1.bf16.msra.mxu0 0
  %338 = vmatprep.subr.bf16.mxu0 0
  %339 = vmatpush1.bf16.msra.mxu0 0
  %340 = vmatprep.subr.bf16.mxu0 0
  %341 = vmatpush1.bf16.msra.mxu0 0
  %342 = vmatprep.subr.bf16.mxu0 0
  %343 = vmatpush1.bf16.msra.mxu0 0
  %344 = vmatprep.subr.bf16.mxu0 0
  %345 = vmatpush1.bf16.msra.mxu0 0
  %346 = vmatprep.subr.bf16.mxu0 0
  %347 = vmatpush1.bf16.msra.mxu0 0
  %348 = vmatprep.subr.bf16.mxu0 0
  %349 = vmatpush1.bf16.msra.mxu0 0
  %350 = vmatprep.subr.bf16.mxu0 0
  %351 = vmatpush1.bf16.msra.mxu0 0
  %352 = vmatprep.subr.bf16.mxu0 0
  %353 = vmatpush1.bf16.msra.mxu0 0
  %354 = vmatprep.subr.bf16.mxu0 0
  %355 = vmatpush1.bf16.msra.mxu0 0
  %356 = vmatprep.subr.bf16.mxu0 0
  %357 = vmatpush1.bf16.msra.mxu0 0
  %358 = vmatprep.subr.bf16.mxu0 0
  %359 = vmatpush1.bf16.msra.mxu0 0
  %360 = vmatprep.subr.bf16.mxu0 0
  %361 = vmatpush1.bf16.msra.mxu0 0
  %362 = vmatprep.mubr.bf16.mxu0 0
  %363 = vmatmul.mubr.bf16.gmra.mrb[0].mxu0 %v230
  %v364 = vpop.f32.mrb[0].mxu0
  %v365 = vadd.f32 0.0, %v364
  %v366 = vpop.f32.mrb[0].mxu0
  %v367 = vpop.f32.mrb[0].mxu0
  %v368 = vpop.f32.mrb[0].mxu0
  %369 = vdwg.mxu0
  %370 = vxpose.xlu0.c.b16.start [1/8] %v70, 128
  %371 = vxpose.xlu0.c.b16.cont [2/8] 0, 128
  %372 = vxpose.xlu0.c.b16.cont [3/8] 0, 128
  %373 = vxpose.xlu0.c.b16.cont [4/8] 0, 128
  %374 = vxpose.xlu0.c.b16.cont [5/8] 0, 128
  %375 = vxpose.xlu0.c.b16.cont [6/8] 0, 128
  %376 = vxpose.xlu0.c.b16.cont [7/8] 0, 128
  %377 = vxpose.xlu0.c.b16.end [8/8] 0, 128
  %v378 = vpop.trf.xlu0
  %v379 = vpop.trf.xlu0
  %v380 = vpop.trf.xlu0
  %v381 = vpop.trf.xlu0
  %v382 = vpop.trf.xlu0
  %v383 = vpop.trf.xlu0
  %v384 = vpop.trf.xlu0
  %v385 = vpop.trf.xlu0
  %v387 = vsel %vm85, %v378, 0
  %v390 = vsel %vm89, %v329, 0
  %392 = vmatprep.subr.bf16.mxu0 0
  %393 = vmatpush1.bf16.msra.mxu0 %v390
  %394 = vmatprep.subr.bf16.mxu0 0
  %395 = vmatpush1.bf16.msra.mxu0 0
  %396 = vmatprep.subr.bf16.mxu0 0
  %397 = vmatpush1.bf16.msra.mxu0 0
  %398 = vmatprep.subr.bf16.mxu0 0
  %399 = vmatpush1.bf16.msra.mxu0 0
  %400 = vmatprep.subr.bf16.mxu0 0
  %401 = vmatpush1.bf16.msra.mxu0 0
  %402 = vmatprep.subr.bf16.mxu0 0
  %403 = vmatpush1.bf16.msra.mxu0 0
  %404 = vmatprep.subr.bf16.mxu0 0
  %405 = vmatpush1.bf16.msra.mxu0 0
  %406 = vmatprep.subr.bf16.mxu0 0
  %407 = vmatpush1.bf16.msra.mxu0 0
  %408 = vmatprep.subr.bf16.mxu0 0
  %409 = vmatpush1.bf16.msra.mxu0 0
  %410 = vmatprep.subr.bf16.mxu0 0
  %411 = vmatpush1.bf16.msra.mxu0 0
  %412 = vmatprep.subr.bf16.mxu0 0
  %413 = vmatpush1.bf16.msra.mxu0 0
  %414 = vmatprep.subr.bf16.mxu0 0
  %415 = vmatpush1.bf16.msra.mxu0 0
  %416 = vmatprep.subr.bf16.mxu0 0
  %417 = vmatpush1.bf16.msra.mxu0 0
  %418 = vmatprep.subr.bf16.mxu0 0
  %419 = vmatpush1.bf16.msra.mxu0 0
  %420 = vmatprep.subr.bf16.mxu0 0
  %421 = vmatpush1.bf16.msra.mxu0 0
  %422 = vmatprep.subr.bf16.mxu0 0
  %423 = vmatpush1.bf16.msra.mxu0 0
  %424 = vmatprep.mubr.bf16.mxu0 0
  %425 = vmatmul.mubr.bf16.gmra.mrb[0].mxu0 %v387
  %v426 = vpop.f32.mrb[0].mxu0
  %v427 = vadd.f32 0.0, %v426
  %v428 = vpop.f32.mrb[0].mxu0
  %v429 = vpop.f32.mrb[0].mxu0
  %v430 = vadd.f32 0.0, %v429
  %v431 = vpop.f32.mrb[0].mxu0
  %432 = vdwg.mxu0
  %v433 = vsel %vm318, %v329, 0
  %vm435 = vcmask 1040384
  %v437 = vsel %vm435, %v135, 0
  %439 = vmatprep.subr.bf16.mxu0 0
  %440 = vmatpush1.bf16.msra.mxu0 %v437
  %441 = vmatprep.subr.bf16.mxu0 0
  %442 = vmatpush1.bf16.msra.mxu0 0
  %443 = vmatprep.subr.bf16.mxu0 0
  %444 = vmatpush1.bf16.msra.mxu0 0
  %445 = vmatprep.subr.bf16.mxu0 0
  %446 = vmatpush1.bf16.msra.mxu0 0
  %447 = vmatprep.subr.bf16.mxu0 0
  %448 = vmatpush1.bf16.msra.mxu0 0
  %449 = vmatprep.subr.bf16.mxu0 0
  %450 = vmatpush1.bf16.msra.mxu0 0
  %451 = vmatprep.subr.bf16.mxu0 0
  %452 = vmatpush1.bf16.msra.mxu0 0
  %453 = vmatprep.subr.bf16.mxu0 0
  %454 = vmatpush1.bf16.msra.mxu0 0
  %455 = vmatprep.subr.bf16.mxu0 0
  %456 = vmatpush1.bf16.msra.mxu0 0
  %457 = vmatprep.subr.bf16.mxu0 0
  %458 = vmatpush1.bf16.msra.mxu0 0
  %459 = vmatprep.subr.bf16.mxu0 0
  %460 = vmatpush1.bf16.msra.mxu0 0
  %461 = vmatprep.subr.bf16.mxu0 0
  %462 = vmatpush1.bf16.msra.mxu0 0
  %463 = vmatprep.subr.bf16.mxu0 0
  %464 = vmatpush1.bf16.msra.mxu0 0
  %465 = vmatprep.subr.bf16.mxu0 0
  %466 = vmatpush1.bf16.msra.mxu0 0
  %467 = vmatprep.subr.bf16.mxu0 0
  %468 = vmatpush1.bf16.msra.mxu0 0
  %469 = vmatprep.subr.bf16.mxu0 0
  %470 = vmatpush1.bf16.msra.mxu0 0
  %471 = vmatprep.mubr.bf16.mxu0 0
  %472 = vmatmul.mubr.bf16.gmra.mrb[0].mxu0 %v433
  %v473 = vpop.f32.mrb[0].mxu0
  %v474 = vadd.f32 0.0, %v473
  %v475 = vpop.f32.mrb[0].mxu0
  %v476 = vpop.f32.mrb[0].mxu0
  %v477 = vpop.f32.mrb[0].mxu0
  %478 = vdwg.mxu0
  %v479 = vmul.f32 %v365, %v474
  %v480 = vpack.c.bf16 %v479, %v479
  %v482 = vsel %vm89, %v480, 0
  %484 = vmatprep.subr.bf16.mxu0 0
  %485 = vmatpush1.bf16.msra.mxu0 %v482
  %486 = vmatprep.subr.bf16.mxu0 0
  %487 = vmatpush1.bf16.msra.mxu0 0
  %488 = vmatprep.subr.bf16.mxu0 0
  %489 = vmatpush1.bf16.msra.mxu0 0
  %490 = vmatprep.subr.bf16.mxu0 0
  %491 = vmatpush1.bf16.msra.mxu0 0
  %492 = vmatprep.subr.bf16.mxu0 0
  %493 = vmatpush1.bf16.msra.mxu0 0
  %494 = vmatprep.subr.bf16.mxu0 0
  %495 = vmatpush1.bf16.msra.mxu0 0
  %496 = vmatprep.subr.bf16.mxu0 0
  %497 = vmatpush1.bf16.msra.mxu0 0
  %498 = vmatprep.subr.bf16.mxu0 0
  %499 = vmatpush1.bf16.msra.mxu0 0
  %500 = vmatprep.subr.bf16.mxu0 0
  %501 = vmatpush1.bf16.msra.mxu0 0
  %502 = vmatprep.subr.bf16.mxu0 0
  %503 = vmatpush1.bf16.msra.mxu0 0
  %504 = vmatprep.subr.bf16.mxu0 0
  %505 = vmatpush1.bf16.msra.mxu0 0
  %506 = vmatprep.subr.bf16.mxu0 0
  %507 = vmatpush1.bf16.msra.mxu0 0
  %508 = vmatprep.subr.bf16.mxu0 0
  %509 = vmatpush1.bf16.msra.mxu0 0
  %510 = vmatprep.subr.bf16.mxu0 0
  %511 = vmatpush1.bf16.msra.mxu0 0
  %512 = vmatprep.subr.bf16.mxu0 0
  %513 = vmatpush1.bf16.msra.mxu0 0
  %514 = vmatprep.subr.bf16.mxu0 0
  %515 = vmatpush1.bf16.msra.mxu0 0
  %516 = vmatprep.mubr.bf16.mxu0 0
  %517 = vmatmul.mubr.bf16.gmra.mrb[0].mxu0 %v387
  %v518 = vpop.f32.mrb[0].mxu0
  %v519 = vadd.f32 0.0, %v518
  %v520 = vpop.f32.mrb[0].mxu0
  %v521 = vpop.f32.mrb[0].mxu0
  %v522 = vadd.f32 0.0, %v521
  %v523 = vpop.f32.mrb[0].mxu0
  %524 = vdwg.mxu0
  %v525 = vpack.c.bf16 %v430, %v427
  %v527 = vsel %vm318, %v525, 0
  %529 = vmatprep.subr.bf16.mxu0 0
  %530 = vmatpush1.bf16.msra.mxu0 %v437
  %531 = vmatprep.subr.bf16.mxu0 0
  %532 = vmatpush1.bf16.msra.mxu0 0
  %533 = vmatprep.subr.bf16.mxu0 0
  %534 = vmatpush1.bf16.msra.mxu0 0
  %535 = vmatprep.subr.bf16.mxu0 0
  %536 = vmatpush1.bf16.msra.mxu0 0
  %537 = vmatprep.subr.bf16.mxu0 0
  %538 = vmatpush1.bf16.msra.mxu0 0
  %539 = vmatprep.subr.bf16.mxu0 0
  %540 = vmatpush1.bf16.msra.mxu0 0
  %541 = vmatprep.subr.bf16.mxu0 0
  %542 = vmatpush1.bf16.msra.mxu0 0
  %543 = vmatprep.subr.bf16.mxu0 0
  %544 = vmatpush1.bf16.msra.mxu0 0
  %545 = vmatprep.subr.bf16.mxu0 0
  %546 = vmatpush1.bf16.msra.mxu0 0
  %547 = vmatprep.subr.bf16.mxu0 0
  %548 = vmatpush1.bf16.msra.mxu0 0
  %549 = vmatprep.subr.bf16.mxu0 0
  %550 = vmatpush1.bf16.msra.mxu0 0
  %551 = vmatprep.subr.bf16.mxu0 0
  %552 = vmatpush1.bf16.msra.mxu0 0
  %553 = vmatprep.subr.bf16.mxu0 0
  %554 = vmatpush1.bf16.msra.mxu0 0
  %555 = vmatprep.subr.bf16.mxu0 0
  %556 = vmatpush1.bf16.msra.mxu0 0
  %557 = vmatprep.subr.bf16.mxu0 0
  %558 = vmatpush1.bf16.msra.mxu0 0
  %559 = vmatprep.subr.bf16.mxu0 0
  %560 = vmatpush1.bf16.msra.mxu0 0
  %561 = vmatprep.mubr.bf16.mxu0 0
  %562 = vmatmul.mubr.bf16.gmra.mrb[0].mxu0 %v527
  %v563 = vpop.f32.mrb[0].mxu0
  %v564 = vadd.f32 0.0, %v563
  %v565 = vpop.f32.mrb[0].mxu0
  %v566 = vpop.f32.mrb[0].mxu0
  %v567 = vadd.f32 0.0, %v566
  %v568 = vpop.f32.mrb[0].mxu0
  %569 = vdwg.mxu0
  %v570 = vmax.f32 %v564, 1e-30
  %v571 = vmax.f32 %v567, 1e-30
  %v572 = vrcp.pop %v570
  %v573 = vmul.f32 %v519, %v572
  %v574 = vrcp.pop %v571
  %v575 = vmul.f32 %v522, %v574
  %v576 = vld [vmem:[%s7] sm:$0x1]
  %v578 = vlaneseq
  %v579 = vshrl.u32 %v578, 7
  %v580 = vsub.s32 0, %v579
  %v581 = vrot.slane %v576, %v580
  %v583 = vadd.f32 %v573, %v581
  %v584 = vadd.f32 %v575, %v581
  %vm585 = vcmp.gt.f32.partialorder %v583, 0.0
  %vm586 = vcmp.gt.f32.partialorder %v584, 0.0
  %v587 = vmin.f32 %v583, 0.0
  %v588 = vmin.f32 %v584, 0.0
  %v589 = vmul.f32 %v587, 1.442695
  %v590 = vpow.pop %v589
  %v591 = vmul.f32 %v588, 1.442695
  %v592 = vpow.pop %v591
  %v593 = vsub.f32 %v590, 1.0
  %v594 = vsub.f32 %v592, 1.0
  %v595 = vsel %vm585, %v583, %v593
  %v596 = vsel %vm586, %v584, %v594
  %v597 = vpack.c.bf16 %v596, %v595
  %v598 = vld [vmem:[%s8] sm:$0xff]
  %v599 = vld [vmem:[%s8 + $0x8] sm:$0xff]
  %v600 = vld [vmem:[%s8 + $0x10] sm:$0xff]
  %v601 = vld [vmem:[%s8 + $0x18] sm:$0xff]
  %v602 = vpack.c.bf16 %v599, %v598
  %v603 = vpack.c.bf16 %v601, %v600
  %v604 = vld [vmem:[%s9] sm:$0xff]
  %v605 = vld [vmem:[%s9 + $0x8] sm:$0xff]
  %v606 = vld [vmem:[%s10] sm:$0xff]
  %v607 = vld [vmem:[%s10 + $0x8] sm:$0xff]
  %v608 = vld [vmem:[%s11] sm:$0x3]
  %v610 = vsel %vm138, %v597, 0
  %612 = vmatprep.subr.bf16.mxu0 0
  %613 = vmatpush1.bf16.msra.mxu0 %v602
  %614 = vmatprep.subr.bf16.mxu0 0
  %615 = vmatpush1.bf16.msra.mxu0 %v603
  %616 = vmatprep.subr.bf16.mxu0 0
  %617 = vmatpush1.bf16.msra.mxu0 0
  %618 = vmatprep.subr.bf16.mxu0 0
  %619 = vmatpush1.bf16.msra.mxu0 0
  %620 = vmatprep.subr.bf16.mxu0 0
  %621 = vmatpush1.bf16.msra.mxu0 0
  %622 = vmatprep.subr.bf16.mxu0 0
  %623 = vmatpush1.bf16.msra.mxu0 0
  %624 = vmatprep.subr.bf16.mxu0 0
  %625 = vmatpush1.bf16.msra.mxu0 0
  %626 = vmatprep.subr.bf16.mxu0 0
  %627 = vmatpush1.bf16.msra.mxu0 0
  %628 = vmatprep.subr.bf16.mxu0 0
  %629 = vmatpush1.bf16.msra.mxu0 0
  %630 = vmatprep.subr.bf16.mxu0 0
  %631 = vmatpush1.bf16.msra.mxu0 0
  %632 = vmatprep.subr.bf16.mxu0 0
  %633 = vmatpush1.bf16.msra.mxu0 0
  %634 = vmatprep.subr.bf16.mxu0 0
  %635 = vmatpush1.bf16.msra.mxu0 0
  %636 = vmatprep.subr.bf16.mxu0 0
  %637 = vmatpush1.bf16.msra.mxu0 0
  %638 = vmatprep.subr.bf16.mxu0 0
  %639 = vmatpush1.bf16.msra.mxu0 0
  %640 = vmatprep.subr.bf16.mxu0 0
  %641 = vmatpush1.bf16.msra.mxu0 0
  %642 = vmatprep.subr.bf16.mxu0 0
  %643 = vmatpush1.bf16.msra.mxu0 0
  %644 = vmatprep.mubr.bf16.mxu0 0
  %645 = vmatmul.mubr.bf16.gmra.mrb[0].mxu0 %v610
  %v646 = vpop.f32.mrb[0].mxu0
  %v647 = vadd.f32 0.0, %v646
  %v648 = vpop.f32.mrb[0].mxu0
  %v649 = vpop.f32.mrb[0].mxu0
  %v650 = vadd.f32 0.0, %v649
  %v651 = vpop.f32.mrb[0].mxu0
  %652 = vdwg.mxu0
  %v653 = vpack.c.bf16 %v650, %v647
  %v654 = vpack.c.bf16 %v608, %v608
  %v655 = vpack.c.bf16 %v605, %v604
  %v657 = vsel %vm228, %v653, 0
  %659 = vmatprep.subr.bf16.mxu0 0
  %660 = vmatpush1.bf16.msra.mxu0 %v655
  %661 = vmatprep.subr.bf16.mxu0 0
  %662 = vmatpush1.bf16.msra.mxu0 0
  %663 = vmatprep.subr.bf16.mxu0 0
  %664 = vmatpush1.bf16.msra.mxu0 0
  %665 = vmatprep.subr.bf16.mxu0 0
  %666 = vmatpush1.bf16.msra.mxu0 0
  %667 = vmatprep.subr.bf16.mxu0 0
  %668 = vmatpush1.bf16.msra.mxu0 0
  %669 = vmatprep.subr.bf16.mxu0 0
  %670 = vmatpush1.bf16.msra.mxu0 0
  %671 = vmatprep.subr.bf16.mxu0 0
  %672 = vmatpush1.bf16.msra.mxu0 0
  %673 = vmatprep.subr.bf16.mxu0 0
  %674 = vmatpush1.bf16.msra.mxu0 0
  %675 = vmatprep.subr.bf16.mxu0 0
  %676 = vmatpush1.bf16.msra.mxu0 0
  %677 = vmatprep.subr.bf16.mxu0 0
  %678 = vmatpush1.bf16.msra.mxu0 0
  %679 = vmatprep.subr.bf16.mxu0 0
  %680 = vmatpush1.bf16.msra.mxu0 0
  %681 = vmatprep.subr.bf16.mxu0 0
  %682 = vmatpush1.bf16.msra.mxu0 0
  %683 = vmatprep.subr.bf16.mxu0 0
  %684 = vmatpush1.bf16.msra.mxu0 0
  %685 = vmatprep.subr.bf16.mxu0 0
  %686 = vmatpush1.bf16.msra.mxu0 0
  %687 = vmatprep.subr.bf16.mxu0 0
  %688 = vmatpush1.bf16.msra.mxu0 0
  %689 = vmatprep.subr.bf16.mxu0 0
  %690 = vmatpush1.bf16.msra.mxu0 0
  %691 = vmatprep.mubr.bf16.mxu0 0
  %692 = vmatmul.mubr.bf16.gmra.mrb[0].mxu0 %v657
  %v693 = vpop.f32.mrb[0].mxu0
  %v694 = vadd.f32 0.0, %v693
  %v695 = vpop.f32.mrb[0].mxu0
  %v696 = vpop.f32.mrb[0].mxu0
  %v697 = vadd.f32 0.0, %v696
  %v698 = vpop.f32.mrb[0].mxu0
  %699 = vdwg.mxu0
  %v700 = vpack.c.bf16 %v697, %v694
  %v701 = vpack.c.bf16 %v607, %v606
  %702 = vmatprep.subr.bf16.mxu0 0
  %703 = vmatpush1.bf16.msra.mxu0 %v701
  %704 = vmatprep.subr.bf16.mxu0 0
  %705 = vmatpush1.bf16.msra.mxu0 0
  %706 = vmatprep.subr.bf16.mxu0 0
  %707 = vmatpush1.bf16.msra.mxu0 0
  %708 = vmatprep.subr.bf16.mxu0 0
  %709 = vmatpush1.bf16.msra.mxu0 0
  %710 = vmatprep.subr.bf16.mxu0 0
  %711 = vmatpush1.bf16.msra.mxu0 0
  %712 = vmatprep.subr.bf16.mxu0 0
  %713 = vmatpush1.bf16.msra.mxu0 0
  %714 = vmatprep.subr.bf16.mxu0 0
  %715 = vmatpush1.bf16.msra.mxu0 0
  %716 = vmatprep.subr.bf16.mxu0 0
  %717 = vmatpush1.bf16.msra.mxu0 0
  %718 = vmatprep.subr.bf16.mxu0 0
  %719 = vmatpush1.bf16.msra.mxu0 0
  %720 = vmatprep.subr.bf16.mxu0 0
  %721 = vmatpush1.bf16.msra.mxu0 0
  %722 = vmatprep.subr.bf16.mxu0 0
  %723 = vmatpush1.bf16.msra.mxu0 0
  %724 = vmatprep.subr.bf16.mxu0 0
  %725 = vmatpush1.bf16.msra.mxu0 0
  %726 = vmatprep.subr.bf16.mxu0 0
  %727 = vmatpush1.bf16.msra.mxu0 0
  %728 = vmatprep.subr.bf16.mxu0 0
  %729 = vmatpush1.bf16.msra.mxu0 0
  %730 = vmatprep.subr.bf16.mxu0 0
  %731 = vmatpush1.bf16.msra.mxu0 0
  %732 = vmatprep.subr.bf16.mxu0 0
  %733 = vmatpush1.bf16.msra.mxu0 0
  %734 = vmatprep.mubr.bf16.mxu0 0
  %735 = vmatmul.mubr.bf16.gmra.mrb[0].mxu0 %v657
  %v736 = vpop.f32.mrb[0].mxu0
  %v737 = vadd.f32 0.0, %v736
  %v738 = vpop.f32.mrb[0].mxu0
  %v739 = vpop.f32.mrb[0].mxu0
  %v740 = vadd.f32 0.0, %v739
  %v741 = vpop.f32.mrb[0].mxu0
  %742 = vdwg.mxu0
  %v743 = vpack.c.bf16 %v740, %v737
  %744 = vmatprep.subr.bf16.mxu0 0
  %745 = vmatpush1.bf16.msra.mxu0 %v743
  %746 = vmatprep.subr.bf16.mxu0 0
  %747 = vmatpush1.bf16.msra.mxu0 0
  %748 = vmatprep.subr.bf16.mxu0 0
  %749 = vmatpush1.bf16.msra.mxu0 0
  %750 = vmatprep.subr.bf16.mxu0 0
  %751 = vmatpush1.bf16.msra.mxu0 0
  %752 = vmatprep.subr.bf16.mxu0 0
  %753 = vmatpush1.bf16.msra.mxu0 0
  %754 = vmatprep.subr.bf16.mxu0 0
  %755 = vmatpush1.bf16.msra.mxu0 0
  %756 = vmatprep.subr.bf16.mxu0 0
  %757 = vmatpush1.bf16.msra.mxu0 0
  %758 = vmatprep.subr.bf16.mxu0 0
  %759 = vmatpush1.bf16.msra.mxu0 0
  %760 = vmatprep.subr.bf16.mxu0 0
  %761 = vmatpush1.bf16.msra.mxu0 0
  %762 = vmatprep.subr.bf16.mxu0 0
  %763 = vmatpush1.bf16.msra.mxu0 0
  %764 = vmatprep.subr.bf16.mxu0 0
  %765 = vmatpush1.bf16.msra.mxu0 0
  %766 = vmatprep.subr.bf16.mxu0 0
  %767 = vmatpush1.bf16.msra.mxu0 0
  %768 = vmatprep.subr.bf16.mxu0 0
  %769 = vmatpush1.bf16.msra.mxu0 0
  %770 = vmatprep.subr.bf16.mxu0 0
  %771 = vmatpush1.bf16.msra.mxu0 0
  %772 = vmatprep.subr.bf16.mxu0 0
  %773 = vmatpush1.bf16.msra.mxu0 0
  %774 = vmatprep.subr.bf16.mxu0 0
  %775 = vmatpush1.bf16.msra.mxu0 0
  %776 = vmatprep.mubr.bf16.mxu0 0
  %777 = vmatmul.mubr.bf16.gmra.mrb[0].mxu0 %v230
  %v778 = vpop.f32.mrb[0].mxu0
  %v779 = vadd.f32 0.0, %v778
  %v780 = vpop.f32.mrb[0].mxu0
  %v781 = vpop.f32.mrb[0].mxu0
  %v782 = vpop.f32.mrb[0].mxu0
  %783 = vdwg.mxu0
  %784 = vmatprep.subr.bf16.mxu0 0
  %785 = vmatpush1.bf16.msra.mxu0 %v700
  %786 = vmatprep.subr.bf16.mxu0 0
  %787 = vmatpush1.bf16.msra.mxu0 0
  %788 = vmatprep.subr.bf16.mxu0 0
  %789 = vmatpush1.bf16.msra.mxu0 0
  %790 = vmatprep.subr.bf16.mxu0 0
  %791 = vmatpush1.bf16.msra.mxu0 0
  %792 = vmatprep.subr.bf16.mxu0 0
  %793 = vmatpush1.bf16.msra.mxu0 0
  %794 = vmatprep.subr.bf16.mxu0 0
  %795 = vmatpush1.bf16.msra.mxu0 0
  %796 = vmatprep.subr.bf16.mxu0 0
  %797 = vmatpush1.bf16.msra.mxu0 0
  %798 = vmatprep.subr.bf16.mxu0 0
  %799 = vmatpush1.bf16.msra.mxu0 0
  %800 = vmatprep.subr.bf16.mxu0 0
  %801 = vmatpush1.bf16.msra.mxu0 0
  %802 = vmatprep.subr.bf16.mxu0 0
  %803 = vmatpush1.bf16.msra.mxu0 0
  %804 = vmatprep.subr.bf16.mxu0 0
  %805 = vmatpush1.bf16.msra.mxu0 0
  %806 = vmatprep.subr.bf16.mxu0 0
  %807 = vmatpush1.bf16.msra.mxu0 0
  %808 = vmatprep.subr.bf16.mxu0 0
  %809 = vmatpush1.bf16.msra.mxu0 0
  %810 = vmatprep.subr.bf16.mxu0 0
  %811 = vmatpush1.bf16.msra.mxu0 0
  %812 = vmatprep.subr.bf16.mxu0 0
  %813 = vmatpush1.bf16.msra.mxu0 0
  %814 = vmatprep.subr.bf16.mxu0 0
  %815 = vmatpush1.bf16.msra.mxu0 0
  %816 = vmatprep.mubr.bf16.mxu0 0
  %817 = vmatmul.mubr.bf16.gmra.mrb[0].mxu0 %v273
  %v818 = vpop.f32.mrb[0].mxu0
  %v819 = vadd.f32 %v779, %v818
  %v820 = vpop.f32.mrb[0].mxu0
  %v821 = vpop.f32.mrb[0].mxu0
  %v822 = vpop.f32.mrb[0].mxu0
  %823 = vdwg.mxu0
  %vm824 = vcmp.gt.f32.partialorder %v819, 0.0
  %v825 = vmul.f32 %v819, 0.2
  %v826 = vsel %vm824, %v819, %v825
  %v827 = vsel %vm318, %v826, -inf
  %v828 = vrot.slane %v827, 4
  %v829 = vmax.f32 %v827, %v828
  %v830 = vrot.slane %v829, 2
  %v831 = vmax.f32 %v829, %v830
  %v832 = vrot.slane %v831, 1
  %v833 = vmax.f32 %v831, %v832
  %v834 = vsub.f32 %v826, %v833
  %v835 = vmul.f32 %v834, 1.442695
  %v836 = vpow.pop %v835
  %v837 = vpack.c.bf16 %v836, %v836
  %838 = vmatprep.subr.bf16.mxu0 0
  %839 = vmatpush1.bf16.msra.mxu0 %v653
  %840 = vmatprep.subr.bf16.mxu0 0
  %841 = vmatpush1.bf16.msra.mxu0 0
  %842 = vmatprep.subr.bf16.mxu0 0
  %843 = vmatpush1.bf16.msra.mxu0 0
  %844 = vmatprep.subr.bf16.mxu0 0
  %845 = vmatpush1.bf16.msra.mxu0 0
  %846 = vmatprep.subr.bf16.mxu0 0
  %847 = vmatpush1.bf16.msra.mxu0 0
  %848 = vmatprep.subr.bf16.mxu0 0
  %849 = vmatpush1.bf16.msra.mxu0 0
  %850 = vmatprep.subr.bf16.mxu0 0
  %851 = vmatpush1.bf16.msra.mxu0 0
  %852 = vmatprep.subr.bf16.mxu0 0
  %853 = vmatpush1.bf16.msra.mxu0 0
  %854 = vmatprep.subr.bf16.mxu0 0
  %855 = vmatpush1.bf16.msra.mxu0 0
  %856 = vmatprep.subr.bf16.mxu0 0
  %857 = vmatpush1.bf16.msra.mxu0 0
  %858 = vmatprep.subr.bf16.mxu0 0
  %859 = vmatpush1.bf16.msra.mxu0 0
  %860 = vmatprep.subr.bf16.mxu0 0
  %861 = vmatpush1.bf16.msra.mxu0 0
  %862 = vmatprep.subr.bf16.mxu0 0
  %863 = vmatpush1.bf16.msra.mxu0 0
  %864 = vmatprep.subr.bf16.mxu0 0
  %865 = vmatpush1.bf16.msra.mxu0 0
  %866 = vmatprep.subr.bf16.mxu0 0
  %867 = vmatpush1.bf16.msra.mxu0 0
  %868 = vmatprep.subr.bf16.mxu0 0
  %869 = vmatpush1.bf16.msra.mxu0 0
  %870 = vmatprep.mubr.bf16.mxu0 0
  %871 = vmatmul.mubr.bf16.gmra.mrb[0].mxu0 %v230
  %v872 = vpop.f32.mrb[0].mxu0
  %v873 = vadd.f32 0.0, %v872
  %v874 = vpop.f32.mrb[0].mxu0
  %v875 = vpop.f32.mrb[0].mxu0
  %v876 = vpop.f32.mrb[0].mxu0
  %877 = vdwg.mxu0
  %v879 = vsel %vm89, %v837, 0
  %881 = vmatprep.subr.bf16.mxu0 0
  %882 = vmatpush1.bf16.msra.mxu0 %v879
  %883 = vmatprep.subr.bf16.mxu0 0
  %884 = vmatpush1.bf16.msra.mxu0 0
  %885 = vmatprep.subr.bf16.mxu0 0
  %886 = vmatpush1.bf16.msra.mxu0 0
  %887 = vmatprep.subr.bf16.mxu0 0
  %888 = vmatpush1.bf16.msra.mxu0 0
  %889 = vmatprep.subr.bf16.mxu0 0
  %890 = vmatpush1.bf16.msra.mxu0 0
  %891 = vmatprep.subr.bf16.mxu0 0
  %892 = vmatpush1.bf16.msra.mxu0 0
  %893 = vmatprep.subr.bf16.mxu0 0
  %894 = vmatpush1.bf16.msra.mxu0 0
  %895 = vmatprep.subr.bf16.mxu0 0
  %896 = vmatpush1.bf16.msra.mxu0 0
  %897 = vmatprep.subr.bf16.mxu0 0
  %898 = vmatpush1.bf16.msra.mxu0 0
  %899 = vmatprep.subr.bf16.mxu0 0
  %900 = vmatpush1.bf16.msra.mxu0 0
  %901 = vmatprep.subr.bf16.mxu0 0
  %902 = vmatpush1.bf16.msra.mxu0 0
  %903 = vmatprep.subr.bf16.mxu0 0
  %904 = vmatpush1.bf16.msra.mxu0 0
  %905 = vmatprep.subr.bf16.mxu0 0
  %906 = vmatpush1.bf16.msra.mxu0 0
  %907 = vmatprep.subr.bf16.mxu0 0
  %908 = vmatpush1.bf16.msra.mxu0 0
  %909 = vmatprep.subr.bf16.mxu0 0
  %910 = vmatpush1.bf16.msra.mxu0 0
  %911 = vmatprep.subr.bf16.mxu0 0
  %912 = vmatpush1.bf16.msra.mxu0 0
  %913 = vmatprep.mubr.bf16.mxu0 0
  %914 = vmatmul.mubr.bf16.gmra.mrb[0].mxu0 %v387
  %v915 = vpop.f32.mrb[0].mxu0
  %v916 = vadd.f32 0.0, %v915
  %v917 = vpop.f32.mrb[0].mxu0
  %v918 = vpop.f32.mrb[0].mxu0
  %v919 = vadd.f32 0.0, %v918
  %v920 = vpop.f32.mrb[0].mxu0
  %921 = vdwg.mxu0
  %v922 = vpack.c.bf16 %v919, %v916
  %923 = vmatprep.subr.bf16.mxu0 0
  %924 = vmatpush1.bf16.msra.mxu0 %v922
  %925 = vmatprep.subr.bf16.mxu0 0
  %926 = vmatpush1.bf16.msra.mxu0 0
  %927 = vmatprep.subr.bf16.mxu0 0
  %928 = vmatpush1.bf16.msra.mxu0 0
  %929 = vmatprep.subr.bf16.mxu0 0
  %930 = vmatpush1.bf16.msra.mxu0 0
  %931 = vmatprep.subr.bf16.mxu0 0
  %932 = vmatpush1.bf16.msra.mxu0 0
  %933 = vmatprep.subr.bf16.mxu0 0
  %934 = vmatpush1.bf16.msra.mxu0 0
  %935 = vmatprep.subr.bf16.mxu0 0
  %936 = vmatpush1.bf16.msra.mxu0 0
  %937 = vmatprep.subr.bf16.mxu0 0
  %938 = vmatpush1.bf16.msra.mxu0 0
  %939 = vmatprep.subr.bf16.mxu0 0
  %940 = vmatpush1.bf16.msra.mxu0 0
  %941 = vmatprep.subr.bf16.mxu0 0
  %942 = vmatpush1.bf16.msra.mxu0 0
  %943 = vmatprep.subr.bf16.mxu0 0
  %944 = vmatpush1.bf16.msra.mxu0 0
  %945 = vmatprep.subr.bf16.mxu0 0
  %946 = vmatpush1.bf16.msra.mxu0 0
  %947 = vmatprep.subr.bf16.mxu0 0
  %948 = vmatpush1.bf16.msra.mxu0 0
  %949 = vmatprep.subr.bf16.mxu0 0
  %950 = vmatpush1.bf16.msra.mxu0 0
  %951 = vmatprep.subr.bf16.mxu0 0
  %952 = vmatpush1.bf16.msra.mxu0 0
  %953 = vmatprep.subr.bf16.mxu0 0
  %954 = vmatpush1.bf16.msra.mxu0 0
  %955 = vmatprep.mubr.bf16.mxu0 0
  %956 = vmatmul.mubr.bf16.gmra.mrb[0].mxu0 %v273
  %v957 = vpop.f32.mrb[0].mxu0
  %v958 = vadd.f32 0.0, %v957
  %v959 = vpop.f32.mrb[0].mxu0
  %v960 = vpop.f32.mrb[0].mxu0
  %v961 = vpop.f32.mrb[0].mxu0
  %962 = vdwg.mxu0
  %v963 = vmax.f32 %v958, 1e-30
  %v964 = vrcp.pop %v963
  %v965 = vmul.f32 %v836, %v964
  %v966 = vpack.c.bf16 %v965, %v965
  %v968 = vsel %vm318, %v966, 0
  %v971 = vsel %vm435, %v654, 0
  %973 = vmatprep.subr.bf16.mxu0 0
  %974 = vmatpush1.bf16.msra.mxu0 %v971
  %975 = vmatprep.subr.bf16.mxu0 0
  %976 = vmatpush1.bf16.msra.mxu0 0
  %977 = vmatprep.subr.bf16.mxu0 0
  %978 = vmatpush1.bf16.msra.mxu0 0
  %979 = vmatprep.subr.bf16.mxu0 0
  %980 = vmatpush1.bf16.msra.mxu0 0
  %981 = vmatprep.subr.bf16.mxu0 0
  %982 = vmatpush1.bf16.msra.mxu0 0
  %983 = vmatprep.subr.bf16.mxu0 0
  %984 = vmatpush1.bf16.msra.mxu0 0
  %985 = vmatprep.subr.bf16.mxu0 0
  %986 = vmatpush1.bf16.msra.mxu0 0
  %987 = vmatprep.subr.bf16.mxu0 0
  %988 = vmatpush1.bf16.msra.mxu0 0
  %989 = vmatprep.subr.bf16.mxu0 0
  %990 = vmatpush1.bf16.msra.mxu0 0
  %991 = vmatprep.subr.bf16.mxu0 0
  %992 = vmatpush1.bf16.msra.mxu0 0
  %993 = vmatprep.subr.bf16.mxu0 0
  %994 = vmatpush1.bf16.msra.mxu0 0
  %995 = vmatprep.subr.bf16.mxu0 0
  %996 = vmatpush1.bf16.msra.mxu0 0
  %997 = vmatprep.subr.bf16.mxu0 0
  %998 = vmatpush1.bf16.msra.mxu0 0
  %999 = vmatprep.subr.bf16.mxu0 0
  %1000 = vmatpush1.bf16.msra.mxu0 0
  %1001 = vmatprep.subr.bf16.mxu0 0
  %1002 = vmatpush1.bf16.msra.mxu0 0
  %1003 = vmatprep.subr.bf16.mxu0 0
  %1004 = vmatpush1.bf16.msra.mxu0 0
  %1005 = vmatprep.mubr.bf16.mxu0 0
  %1006 = vmatmul.mubr.bf16.gmra.mrb[0].mxu0 %v968
  %v1007 = vpop.f32.mrb[0].mxu0
  %v1008 = vadd.f32 0.0, %v1007
  %v1009 = vpop.f32.mrb[0].mxu0
  %v1010 = vpop.f32.mrb[0].mxu0
  %v1011 = vpop.f32.mrb[0].mxu0
  %1012 = vdwg.mxu0
  %v1013 = vmul.f32 %v873, %v1008
  %v1014 = vpack.c.bf16 %v1013, %v1013
  %v1016 = vsel %vm89, %v1014, 0
  %1018 = vmatprep.subr.bf16.mxu0 0
  %1019 = vmatpush1.bf16.msra.mxu0 %v1016
  %1020 = vmatprep.subr.bf16.mxu0 0
  %1021 = vmatpush1.bf16.msra.mxu0 0
  %1022 = vmatprep.subr.bf16.mxu0 0
  %1023 = vmatpush1.bf16.msra.mxu0 0
  %1024 = vmatprep.subr.bf16.mxu0 0
  %1025 = vmatpush1.bf16.msra.mxu0 0
  %1026 = vmatprep.subr.bf16.mxu0 0
  %1027 = vmatpush1.bf16.msra.mxu0 0
  %1028 = vmatprep.subr.bf16.mxu0 0
  %1029 = vmatpush1.bf16.msra.mxu0 0
  %1030 = vmatprep.subr.bf16.mxu0 0
  %1031 = vmatpush1.bf16.msra.mxu0 0
  %1032 = vmatprep.subr.bf16.mxu0 0
  %1033 = vmatpush1.bf16.msra.mxu0 0
  %1034 = vmatprep.subr.bf16.mxu0 0
  %1035 = vmatpush1.bf16.msra.mxu0 0
  %1036 = vmatprep.subr.bf16.mxu0 0
  %1037 = vmatpush1.bf16.msra.mxu0 0
  %1038 = vmatprep.subr.bf16.mxu0 0
  %1039 = vmatpush1.bf16.msra.mxu0 0
  %1040 = vmatprep.subr.bf16.mxu0 0
  %1041 = vmatpush1.bf16.msra.mxu0 0
  %1042 = vmatprep.subr.bf16.mxu0 0
  %1043 = vmatpush1.bf16.msra.mxu0 0
  %1044 = vmatprep.subr.bf16.mxu0 0
  %1045 = vmatpush1.bf16.msra.mxu0 0
  %1046 = vmatprep.subr.bf16.mxu0 0
  %1047 = vmatpush1.bf16.msra.mxu0 0
  %1048 = vmatprep.subr.bf16.mxu0 0
  %1049 = vmatpush1.bf16.msra.mxu0 0
  %1050 = vmatprep.mubr.bf16.mxu0 0
  %1051 = vmatmul.mubr.bf16.gmra.mrb[0].mxu0 %v387
  %v1052 = vpop.f32.mrb[0].mxu0
  %v1053 = vadd.f32 0.0, %v1052
  %v1054 = vpop.f32.mrb[0].mxu0
  %v1055 = vpop.f32.mrb[0].mxu0
  %v1056 = vadd.f32 0.0, %v1055
  %v1057 = vpop.f32.mrb[0].mxu0
  %1058 = vdwg.mxu0
  %v1059 = vpack.c.bf16 %v1056, %v1053
  %v1060 = vld [vmem:[%s12] sm:$0xff]
  %v1061 = vld [vmem:[%s12 + $0x8] sm:$0xff]
  %v1062 = vpack.c.bf16 %v1061, %v1060
  %v1063 = vld [vmem:[%s13] sm:$0x1]
  %v1065 = vlaneseq
  %v1066 = vshrl.u32 %v1065, 7
  %v1067 = vsub.s32 0, %v1066
  %v1068 = vrot.slane %v1063, %v1067
  %v1071 = vsel %vm228, %v1059, 0
  %1073 = vmatprep.subr.bf16.mxu0 0
  %1074 = vmatpush1.bf16.msra.mxu0 %v1062
  %1075 = vmatprep.subr.bf16.mxu0 0
  %1076 = vmatpush1.bf16.msra.mxu0 0
  %1077 = vmatprep.subr.bf16.mxu0 0
  %1078 = vmatpush1.bf16.msra.mxu0 0
  %1079 = vmatprep.subr.bf16.mxu0 0
  %1080 = vmatpush1.bf16.msra.mxu0 0
  %1081 = vmatprep.subr.bf16.mxu0 0
  %1082 = vmatpush1.bf16.msra.mxu0 0
  %1083 = vmatprep.subr.bf16.mxu0 0
  %1084 = vmatpush1.bf16.msra.mxu0 0
  %1085 = vmatprep.subr.bf16.mxu0 0
  %1086 = vmatpush1.bf16.msra.mxu0 0
  %1087 = vmatprep.subr.bf16.mxu0 0
  %1088 = vmatpush1.bf16.msra.mxu0 0
  %1089 = vmatprep.subr.bf16.mxu0 0
  %1090 = vmatpush1.bf16.msra.mxu0 0
  %1091 = vmatprep.subr.bf16.mxu0 0
  %1092 = vmatpush1.bf16.msra.mxu0 0
  %1093 = vmatprep.subr.bf16.mxu0 0
  %1094 = vmatpush1.bf16.msra.mxu0 0
  %1095 = vmatprep.subr.bf16.mxu0 0
  %1096 = vmatpush1.bf16.msra.mxu0 0
  %1097 = vmatprep.subr.bf16.mxu0 0
  %1098 = vmatpush1.bf16.msra.mxu0 0
  %1099 = vmatprep.subr.bf16.mxu0 0
  %1100 = vmatpush1.bf16.msra.mxu0 0
  %1101 = vmatprep.subr.bf16.mxu0 0
  %1102 = vmatpush1.bf16.msra.mxu0 0
  %1103 = vmatprep.subr.bf16.mxu0 0
  %1104 = vmatpush1.bf16.msra.mxu0 0
  %1105 = vmatprep.mubr.bf16.mxu0 0
  %1106 = vmatmul.mubr.bf16.gmra.mrb[0].mxu0 %v1071
  %v1107 = vpop.f32.mrb[0].mxu0
  %v1108 = vadd.f32 %v1068, %v1107
  %v1109 = vpop.f32.mrb[0].mxu0
  %v1110 = vpop.f32.mrb[0].mxu0
  %v1111 = vadd.f32 %v1068, %v1110
  %v1112 = vpop.f32.mrb[0].mxu0
  %1113 = vdwg.mxu0
  %1114 = vst [vmem:[%s15] sm:$0xff] %v1108
  %1115 = vst [vmem:[%s15 + $0x8] sm:$0xff] %v1111
  %v1116 = vld [vmem:[%s14] sm:$0x3]
  %v1117 = vpack.c.bf16 %v1116, %v1116
  %v1119 = vsel %vm435, %v1117, 0
  %1121 = vmatprep.subr.bf16.mxu0 0
  %1122 = vmatpush1.bf16.msra.mxu0 %v1119
  %1123 = vmatprep.subr.bf16.mxu0 0
  %1124 = vmatpush1.bf16.msra.mxu0 0
  %1125 = vmatprep.subr.bf16.mxu0 0
  %1126 = vmatpush1.bf16.msra.mxu0 0
  %1127 = vmatprep.subr.bf16.mxu0 0
  %1128 = vmatpush1.bf16.msra.mxu0 0
  %1129 = vmatprep.subr.bf16.mxu0 0
  %1130 = vmatpush1.bf16.msra.mxu0 0
  %1131 = vmatprep.subr.bf16.mxu0 0
  %1132 = vmatpush1.bf16.msra.mxu0 0
  %1133 = vmatprep.subr.bf16.mxu0 0
  %1134 = vmatpush1.bf16.msra.mxu0 0
  %1135 = vmatprep.subr.bf16.mxu0 0
  %1136 = vmatpush1.bf16.msra.mxu0 0
  %1137 = vmatprep.subr.bf16.mxu0 0
  %1138 = vmatpush1.bf16.msra.mxu0 0
  %1139 = vmatprep.subr.bf16.mxu0 0
  %1140 = vmatpush1.bf16.msra.mxu0 0
  %1141 = vmatprep.subr.bf16.mxu0 0
  %1142 = vmatpush1.bf16.msra.mxu0 0
  %1143 = vmatprep.subr.bf16.mxu0 0
  %1144 = vmatpush1.bf16.msra.mxu0 0
  %1145 = vmatprep.subr.bf16.mxu0 0
  %1146 = vmatpush1.bf16.msra.mxu0 0
  %1147 = vmatprep.subr.bf16.mxu0 0
  %1148 = vmatpush1.bf16.msra.mxu0 0
  %1149 = vmatprep.subr.bf16.mxu0 0
  %1150 = vmatpush1.bf16.msra.mxu0 0
  %1151 = vmatprep.subr.bf16.mxu0 0
  %1152 = vmatpush1.bf16.msra.mxu0 0
  %1153 = vmatprep.mubr.bf16.mxu0 0
  %1154 = vmatmul.mubr.bf16.gmra.mrb[0].mxu0 %v968
  %v1155 = vpop.f32.mrb[0].mxu0
  %v1156 = vadd.f32 0.0, %v1155
  %v1157 = vpop.f32.mrb[0].mxu0
  %v1158 = vpop.f32.mrb[0].mxu0
  %v1159 = vpop.f32.mrb[0].mxu0
  %1160 = vdwg.mxu0
  %1161 = vst [vmem:[%s16] sm:$0xff] %v1156
  // Predicated region
  $region62: #{pagat_net_forward.1} parent=0 // pred_check
    _
  $region63: #{pagat_net_forward.1} parent=0 // pred_check_branch
    %1163 = sbr.rel (0) target = $region65
  $region64: #{pagat_net_forward.1} parent=0 // pred_region
    _
  $region65: #{pagat_net_forward.1} parent=0 // pred_fallthru
    _
  // Predicated region
  $region66: #{pagat_net_forward.1} parent=0 // pred_check
    _
  $region67: #{pagat_net_forward.1} parent=0 // pred_check_branch
    %1165 = sbr.rel (0) target = $region69
  $region68: #{pagat_net_forward.1} parent=0 // pred_region
    _
  $region69: #{pagat_net_forward.1} parent=0 // pred_fallthru
    _
  // Predicated region
  $region70: #{pagat_net_forward.1} parent=0 // pred_check
    _
  $region71: #{pagat_net_forward.1} parent=0 // pred_check_branch
    %1167 = sbr.rel (0) target = $region73
  $region72: #{pagat_net_forward.1} parent=0 // pred_region
    _
  $region73: #{pagat_net_forward.1} parent=0 // pred_fallthru
    _
  // Predicated region
  $region74: #{pagat_net_forward.1} parent=0 // pred_check
    _
  $region75: #{pagat_net_forward.1} parent=0 // pred_check_branch
    %1169 = sbr.rel (0) target = $region77
  $region76: #{pagat_net_forward.1} parent=0 // pred_region
    _
  $region77: #{pagat_net_forward.1} parent=0 // pred_fallthru
    _

</llo_original>
